<compile_context>
chip_gen: v6e
topology: v6e:2x2x1
jax: 0.10.0
libtpu: 0.0.40
codegen_flags: <defaults>
</compile_context>

<pallas_src>
import functools

import numpy as np
import jax
import jax.numpy as jnp
from jax import lax
from jax.experimental import pallas as pl
from jax.experimental.pallas import tpu as pltpu


def _encoder_frames_kernel(frames_ref, lens_ref, w_in_ref, w_hh_ref, b_ref,
                           out_ref, xg_ref, h_ref, c_ref,
                           *, chunk_t, batch_shard, hid):
    """Fused linear + masked LSTM recurrence for one (batch-shard, time-chunk).

    frames_ref : (Tc*BS, V)   bf16  time-major frames for this shard/chunk
    lens_ref   : (BS, 1)      i32   per-row sequence lengths (global)
    w_in_ref   : (V, 4H)      bf16  (W_ih @ W_lin).T  -- fused input projection
    w_hh_ref   : (H, 4H)      bf16  W_hh.T (gate-concatenated, pre-transposed)
    b_ref      : (1, 4H)      f32   b_ih + b_hh
    out_ref    : (Tc*BS, H)   f32   time-major output for this shard/chunk
    xg_ref     : (Tc*BS, 4H)  f32   scratch: input-side gates for the chunk
    h_ref/c_ref: (BS, H)      f32   persistent recurrent state across chunks
    """
    BS = batch_shard
    H = hid
    chunk = pl.program_id(1)

    # New batch shard starts -> reset the recurrent state.
    @pl.when(chunk == 0)
    def _():
        h_ref[...] = jnp.zeros_like(h_ref)
        c_ref[...] = jnp.zeros_like(c_ref)

    # One well-shaped bf16 MXU matmul for every timestep of this chunk and all
    # four gates; f32 accumulation; bias broadcast-added once (off the serial
    # recurrence path).
    xg_ref[...] = (
        jnp.dot(frames_ref[...], w_in_ref[...],
                preferred_element_type=jnp.float32)
        + b_ref[...])

    w_hh_t = w_hh_ref[...]          # (H, 4H) bf16 -- loaded once per chunk
    lens = lens_ref[...]            # (BS, 1) i32  -- loaded once per chunk
    t_base = chunk * chunk_t        # global time offset of this chunk

    def step(t, carry):
        h, c = carry
        off = pl.multiple_of(t * BS, BS)
        # Single recurrent matmul; gate layout is [i | f | g | o] over 4H.
        gates = xg_ref[pl.ds(off, BS), :] + jnp.dot(
            h.astype(jnp.bfloat16), w_hh_t,
            preferred_element_type=jnp.float32)
        if_g = jax.nn.sigmoid(gates[:, :2 * H])     # fused i|f EUP push
        i_g = if_g[:, :H]
        f_g = if_g[:, H:]
        g_g = jnp.tanh(gates[:, 2 * H:3 * H])
        o_g = jax.nn.sigmoid(gates[:, 3 * H:])

        c_new = f_g * c + i_g * g_g
        h_new = o_g * jnp.tanh(c_new)

        keep = (t_base + t) < lens                  # (BS, 1) bool, in-register
        h = jnp.where(keep, h_new, h)               # freeze state when padded
        c = jnp.where(keep, c_new, c)
        out_ref[pl.ds(off, BS), :] = jnp.where(keep, h_new, 0.0)
        return (h, c)

    h_fin, c_fin = lax.fori_loop(0, chunk_t, step, (h_ref[...], c_ref[...]),
                                 unroll=min(chunk_t, 8))
    h_ref[...] = h_fin
    c_ref[...] = c_fin


def encoder_frames_forward(frames, flengths, w_lin, w_ih, w_hh, b_gates,
                           *, time_chunk=8):
    """frames (B, T, V) f32, flengths (B,) host ints -> (B, max(flengths), H)."""
    B, T, V = frames.shape
    H = w_hh.shape[1]                       # w_hh: (4H, H)
    assert w_hh.shape[0] == 4 * H and w_ih.shape[0] == 4 * H

    # flengths is host metadata (exactly as in the PyTorch module): the
    # pad_packed_sequence trim to max(flengths) is a static shape decision.
    lens_np = np.asarray(flengths, dtype=np.int32)
    T_out = max(int(lens_np.max()), 1)

    BS = 8                                  # batch shard = one sublane group
    NS = -(-B // BS)                        # ceil(B / 8) shards
    B_pad = NS * BS
    Tc = max(1, int(time_chunk))            # time chunk (grid-pipelined)
    NC = -(-T_out // Tc)
    T_pad = NC * Tc

    # --- wrapper-side layout plumbing (free XLA ops, off the serial path) ---
    # Fuse Linear into the LSTM input weights, pre-transpose, cast the MXU
    # operands to bf16.
    w_comb = w_ih.astype(jnp.float32) @ w_lin.astype(jnp.float32)   # (4H, V)
    w_in_t = w_comb.T.astype(jnp.bfloat16)                          # (V, 4H)
    w_hh_t = w_hh.T.astype(jnp.bfloat16)                            # (H, 4H)
    bias = b_gates.reshape(1, 4 * H).astype(jnp.float32)

    # Pad batch to a multiple of 8 and time to a multiple of Tc; lay frames
    # out per-shard, time-major: (NS, T_pad*BS, V).
    f = frames[:, :min(T, T_pad), :].astype(jnp.float32)
    f = jnp.pad(f, ((0, B_pad - B), (0, T_pad - f.shape[1]), (0, 0)))
    frames_tm = (f.reshape(NS, BS, T_pad, V)
                  .transpose(0, 2, 1, 3)
                  .reshape(NS, T_pad * BS, V)
                  .astype(jnp.bfloat16))

    lens_pad = np.zeros((B_pad,), np.int32)
    lens_pad[:B] = lens_np
    lens_arr = jnp.asarray(lens_pad).reshape(NS, BS, 1)

    kernel = functools.partial(_encoder_frames_kernel,
                               chunk_t=Tc, batch_shard=BS, hid=H)
    out_tm = pl.pallas_call(
        kernel,
        out_shape=jax.ShapeDtypeStruct((NS, T_pad * BS, H), jnp.float32),
        grid_spec=pltpu.PrefetchScalarGridSpec(
            num_scalar_prefetch=0,
            grid=(NS, NC),
            in_specs=[
                # per-(shard, chunk) frame tile -- auto double-buffered DMA
                pl.BlockSpec((pl.Squeezed(), Tc * BS, V),
                             lambda s, c: (s, c, 0)),
                # per-shard lengths (constant across the chunk axis)
                pl.BlockSpec((pl.Squeezed(), BS, 1),
                             lambda s, c: (s, 0, 0)),
                # weights / bias: constant block index -> resident
                pl.BlockSpec((V, 4 * H), lambda s, c: (0, 0)),
                pl.BlockSpec((H, 4 * H), lambda s, c: (0, 0)),
                pl.BlockSpec((1, 4 * H), lambda s, c: (0, 0)),
            ],
            out_specs=pl.BlockSpec((pl.Squeezed(), Tc * BS, H),
                                   lambda s, c: (s, c, 0)),
            scratch_shapes=[
                pltpu.VMEM((Tc * BS, 4 * H), jnp.float32),   # xg (chunk gates)
                pltpu.VMEM((BS, H), jnp.float32),            # h (persistent)
                pltpu.VMEM((BS, H), jnp.float32),            # c (persistent)
            ],
        ),
        compiler_params=pltpu.CompilerParams(
            dimension_semantics=("parallel", "arbitrary")),
    )(frames_tm, lens_arr, w_in_t, w_hh_t, bias)

    # Back to batch-first (B, max(flengths), H), matching the PyTorch output.
    out = (out_tm.reshape(NS, T_pad, BS, H)
                 .transpose(0, 2, 1, 3)
                 .reshape(B_pad, T_pad, H))
    return out[:B, :T_out, :]


def _reference(frames, lengths, w_lin, w_ih, w_hh, b_gates):
    """Pure-JAX f32 reference mirroring PyTorch pack/LSTM/pad semantics."""
    B, T, V = frames.shape
    H = w_hh.shape[1]
    emb = frames @ w_lin.T
    h = jnp.zeros((B, H), jnp.float32)
    c = jnp.zeros((B, H), jnp.float32)
    outs = []
    for t in range(T):
        gates = emb[:, t, :] @ w_ih.T + h @ w_hh.T + b_gates
        i_g, f_g, g_g, o_g = jnp.split(gates, 4, axis=1)
        i_g, f_g, o_g = jax.nn.sigmoid(i_g), jax.nn.sigmoid(f_g), jax.nn.sigmoid(o_g)
        g_g = jnp.tanh(g_g)
        c_new = f_g * c + i_g * g_g
        h_new = o_g * jnp.tanh(c_new)
        mask = (lengths > t)[:, None]
        h = jnp.where(mask, h_new, h)
        c = jnp.where(mask, c_new, c)
        outs.append(jnp.where(mask, h_new, 0.0))
    return jnp.stack(outs, axis=1)


if __name__ == "__main__":
    # Small config consistent with the module:
    #   vid_dim=32, embed=32, hid=32, num_layers=1, birnn=False, dropout=0
    B, T, VID, EMB, HID = 2, 8, 32, 32, 32

    key = jax.random.PRNGKey(0)
    k_frames, k_lin, k_ih, k_hh = jax.random.split(key, 4)

    frames = jax.random.normal(k_frames, (B, T, VID), dtype=jnp.float32)
    flengths_np = np.array([7, 5], dtype=np.int32)           # variable lengths

    # init_weights(): uniform(-0.08, 0.08) for weights, zeros for LSTM biases.
    w_lin = jax.random.uniform(k_lin, (EMB, VID), jnp.float32, -0.08, 0.08)
    w_ih = jax.random.uniform(k_ih, (4 * HID, EMB), jnp.float32, -0.08, 0.08)
    w_hh = jax.random.uniform(k_hh, (4 * HID, HID), jnp.float32, -0.08, 0.08)
    b_gates = jnp.zeros((4 * HID,), jnp.float32)              # b_ih + b_hh = 0

    outputs = encoder_frames_forward(frames, flengths_np, w_lin, w_ih, w_hh,
                                     b_gates, time_chunk=8)
    outputs = jax.block_until_ready(outputs)

    # pad_packed_sequence pads only to max(flengths)
    T_out = int(flengths_np.max())
    assert outputs.shape == (B, T_out, HID), outputs.shape

    ref = _reference(frames, jnp.asarray(flengths_np),
                     w_lin, w_ih, w_hh, b_gates)[:, :T_out, :]
    # bf16 MXU operands vs. the f32 reference: slightly looser tolerance.
    np.testing.assert_allclose(np.asarray(outputs), np.asarray(ref),
                               rtol=1e-2, atol=2e-3)

    print("KERNEL_OK")
</pallas_src>

<mosaic_0001>
module attributes {stable_mosaic.version = 11 : i64} {
  func.func @_encoder_frames_kernel(%arg0: i32, %arg1: i32, %arg2: memref<1x64x32xbf16, #tpu.memory_space<vmem>>, %arg3: memref<1x8x1xi32, #tpu.memory_space<vmem>>, %arg4: memref<32x128xbf16, #tpu.memory_space<vmem>>, %arg5: memref<32x128xbf16, #tpu.memory_space<vmem>>, %arg6: memref<1x128xf32, #tpu.memory_space<vmem>>, %arg7: memref<1x64x32xf32, #tpu.memory_space<vmem>>, %arg8: memref<64x128xf32, #tpu.memory_space<vmem>>, %arg9: memref<8x32xf32, #tpu.memory_space<vmem>>, %arg10: memref<8x32xf32, #tpu.memory_space<vmem>>) attributes {dimension_semantics = [#tpu.dimension_semantics<parallel>, #tpu.dimension_semantics<arbitrary>], iteration_bounds = array<i64: 1, 1>, scalar_prefetch = 0 : i64, scratch_operands = 3 : i64, tpu.core_type = #tpu.core_type<tc>, window_params = [{transform_indices = @transform_0, window_bounds = array<i64: 1, 64, 32>}, {transform_indices = @transform_1, window_bounds = array<i64: 1, 8, 1>}, {pipeline_mode = #tpu.pipeline_mode<synchronous>, transform_indices = @transform_2, window_bounds = array<i64: 32, 128>}, {pipeline_mode = #tpu.pipeline_mode<synchronous>, transform_indices = @transform_3, window_bounds = array<i64: 32, 128>}, {pipeline_mode = #tpu.pipeline_mode<synchronous>, transform_indices = @transform_4, window_bounds = array<i64: 1, 128>}, {transform_indices = @transform_5, window_bounds = array<i64: 1, 64, 32>}]} {
    %c0_i32 = arith.constant 0 : i32
    %0 = arith.cmpi eq, %arg1, %c0_i32 : i32
    %1 = arith.extui %0 : i1 to i32
    %c0_i32_0 = arith.constant 0 : i32
    %2 = arith.cmpi ne, %1, %c0_i32_0 : i32
    scf.if %2 {
      %cst_88 = arith.constant 0.000000e+00 : f32
      %379 = vector.broadcast %cst_88 : f32 to vector<8x32xf32>
      %c0_89 = arith.constant 0 : index
      %c0_90 = arith.constant 0 : index
      %380 = vector.load %arg9[%c0_89, %c0_90] : memref<8x32xf32, #tpu.memory_space<vmem>>, vector<8x32xf32>
      tpu.vector_store %arg9[%c0_89, %c0_90], %379 {strides = array<i32>} : memref<8x32xf32, #tpu.memory_space<vmem>>, vector<8x32xf32>,
      %cst_91 = arith.constant 0.000000e+00 : f32
      %381 = vector.broadcast %cst_91 : f32 to vector<8x32xf32>
      %c0_92 = arith.constant 0 : index
      %c0_93 = arith.constant 0 : index
      %382 = vector.load %arg10[%c0_92, %c0_93] : memref<8x32xf32, #tpu.memory_space<vmem>>, vector<8x32xf32>
      tpu.vector_store %arg10[%c0_92, %c0_93], %381 {strides = array<i32>} : memref<8x32xf32, #tpu.memory_space<vmem>>, vector<8x32xf32>,
    } else {
    }
    %c0 = arith.constant 0 : index
    %c0_1 = arith.constant 0 : index
    %c0_2 = arith.constant 0 : index
    %3 = vector.load %arg2[%c0, %c0_1, %c0_2] : memref<1x64x32xbf16, #tpu.memory_space<vmem>>, vector<1x64x32xbf16>
    %4 = vector.shape_cast %3 : vector<1x64x32xbf16> to vector<64x32xbf16>
    %c0_3 = arith.constant 0 : index
    %c0_4 = arith.constant 0 : index
    %5 = vector.load %arg4[%c0_3, %c0_4] : memref<32x128xbf16, #tpu.memory_space<vmem>>, vector<32x128xbf16>
    %cst = arith.constant dense<0.000000e+00> : vector<64x128xf32>
    %6 = tpu.matmul %4, %5, %cst {dimension_numbers = #tpu.dot_dimension_numbers<[1], [0], [0], [1], [0, 0, 1, 1], [], []>} : vector<64x32xbf16>, vector<32x128xbf16>, vector<64x128xf32> -> vector<64x128xf32>
    %c0_5 = arith.constant 0 : index
    %c0_6 = arith.constant 0 : index
    %7 = vector.load %arg6[%c0_5, %c0_6] : memref<1x128xf32, #tpu.memory_space<vmem>>, vector<1x128xf32>
    %8 = vector.broadcast %7 : vector<1x128xf32> to vector<64x128xf32>
    %9 = arith.addf %6, %8 : vector<64x128xf32>
    %c0_7 = arith.constant 0 : index
    %c0_8 = arith.constant 0 : index
    %10 = vector.load %arg8[%c0_7, %c0_8] : memref<64x128xf32, #tpu.memory_space<vmem>>, vector<64x128xf32>
    tpu.vector_store %arg8[%c0_7, %c0_8], %9 {strides = array<i32>} : memref<64x128xf32, #tpu.memory_space<vmem>>, vector<64x128xf32>,
    %c0_9 = arith.constant 0 : index
    %c0_10 = arith.constant 0 : index
    %11 = vector.load %arg5[%c0_9, %c0_10] : memref<32x128xbf16, #tpu.memory_space<vmem>>, vector<32x128xbf16>
    %c0_11 = arith.constant 0 : index
    %c0_12 = arith.constant 0 : index
    %c0_13 = arith.constant 0 : index
    %12 = vector.load %arg3[%c0_11, %c0_12, %c0_13] : memref<1x8x1xi32, #tpu.memory_space<vmem>>, vector<1x8x1xi32>
    %13 = vector.shape_cast %12 : vector<1x8x1xi32> to vector<8x1xi32>
    %c8_i32 = arith.constant 8 : i32
    %14 = arith.muli %arg1, %c8_i32 : i32
    %c0_14 = arith.constant 0 : index
    %c0_15 = arith.constant 0 : index
    %15 = vector.load %arg9[%c0_14, %c0_15] : memref<8x32xf32, #tpu.memory_space<vmem>>, vector<8x32xf32>
    %c0_16 = arith.constant 0 : index
    %c0_17 = arith.constant 0 : index
    %16 = vector.load %arg10[%c0_16, %c0_17] : memref<8x32xf32, #tpu.memory_space<vmem>>, vector<8x32xf32>
    %c0_i32_18 = arith.constant 0 : i32
    %c8_i32_19 = arith.constant 8 : i32
    %17 = arith.muli %c0_i32_18, %c8_i32_19 : i32
    %18 = tpu.assume_multiple %17, 8 : i32
    %19 = arith.index_cast %18 : i32 to index
    %c0_20 = arith.constant 0 : index
    %20 = vector.load %arg8[%19, %c0_20] : memref<64x128xf32, #tpu.memory_space<vmem>>, vector<8x128xf32>
    %21 = arith.truncf %15 : vector<8x32xf32> to vector<8x32xbf16>
    %cst_21 = arith.constant dense<0.000000e+00> : vector<8x128xf32>
    %22 = tpu.matmul %21, %11, %cst_21 {dimension_numbers = #tpu.dot_dimension_numbers<[1], [0], [0], [1], [0, 0, 1, 1], [], []>} : vector<8x32xbf16>, vector<32x128xbf16>, vector<8x128xf32> -> vector<8x128xf32>
    %23 = arith.addf %20, %22 : vector<8x128xf32>
    %24 = vector.extract_strided_slice %23 {offsets = [0, 0], sizes = [8, 64], strides = [1, 1]} : vector<8x128xf32> to vector<8x64xf32>
    %25 = arith.negf %24 : vector<8x64xf32>
    %26 = math.exp %25 : vector<8x64xf32>
    %cst_22 = arith.constant 1.000000e+00 : f32
    %27 = vector.broadcast %cst_22 : f32 to vector<8x64xf32>
    %28 = arith.addf %27, %26 : vector<8x64xf32>
    %29 = arith.divf %27, %28 : vector<8x64xf32>
    %30 = vector.extract_strided_slice %29 {offsets = [0, 0], sizes = [8, 32], strides = [1, 1]} : vector<8x64xf32> to vector<8x32xf32>
    %31 = vector.extract_strided_slice %29 {offsets = [0, 32], sizes = [8, 32], strides = [1, 1]} : vector<8x64xf32> to vector<8x32xf32>
    %32 = vector.extract_strided_slice %23 {offsets = [0, 64], sizes = [8, 32], strides = [1, 1]} : vector<8x128xf32> to vector<8x32xf32>
    %33 = math.tanh %32 : vector<8x32xf32>
    %34 = vector.extract_strided_slice %23 {offsets = [0, 96], sizes = [8, 32], strides = [1, 1]} : vector<8x128xf32> to vector<8x32xf32>
    %35 = arith.negf %34 : vector<8x32xf32>
    %36 = math.exp %35 : vector<8x32xf32>
    %cst_23 = arith.constant 1.000000e+00 : f32
    %37 = vector.broadcast %cst_23 : f32 to vector<8x32xf32>
    %38 = arith.addf %37, %36 : vector<8x32xf32>
    %39 = arith.divf %37, %38 : vector<8x32xf32>
    %40 = arith.mulf %31, %16 : vector<8x32xf32>
    %41 = arith.mulf %30, %33 : vector<8x32xf32>
    %42 = arith.addf %40, %41 : vector<8x32xf32>
    %43 = math.tanh %42 : vector<8x32xf32>
    %44 = arith.mulf %39, %43 : vector<8x32xf32>
    %45 = arith.addi %14, %c0_i32_18 : i32
    %46 = vector.broadcast %45 : i32 to vector<8x1xi32>
    %47 = arith.cmpi slt, %46, %13 : vector<8x1xi32>
    %48 = vector.shape_cast %47 : vector<8x1xi1> to vector<8x1xi1>
    %49 = vector.broadcast %48 : vector<8x1xi1> to vector<8x32xi1>
    %50 = arith.select %49, %44, %15 : vector<8x32xi1>, vector<8x32xf32>
    %51 = vector.shape_cast %47 : vector<8x1xi1> to vector<8x1xi1>
    %52 = vector.broadcast %51 : vector<8x1xi1> to vector<8x32xi1>
    %53 = arith.select %52, %42, %16 : vector<8x32xi1>, vector<8x32xf32>
    %cst_24 = arith.constant 0.000000e+00 : f32
    %54 = vector.shape_cast %47 : vector<8x1xi1> to vector<8x1xi1>
    %55 = vector.broadcast %54 : vector<8x1xi1> to vector<8x32xi1>
    %56 = vector.broadcast %cst_24 : f32 to vector<8x32xf32>
    %57 = arith.select %55, %44, %56 : vector<8x32xi1>, vector<8x32xf32>
    %c0_25 = arith.constant 0 : index
    %58 = arith.index_cast %18 : i32 to index
    %c0_26 = arith.constant 0 : index
    %59 = vector.load %arg7[%c0_25, %58, %c0_26] : memref<1x64x32xf32, #tpu.memory_space<vmem>>, vector<1x8x32xf32>
    %60 = vector.shape_cast %59 : vector<1x8x32xf32> to vector<8x32xf32>
    %61 = vector.shape_cast %57 : vector<8x32xf32> to vector<1x8x32xf32>
    tpu.vector_store %arg7[%c0_25, %58, %c0_26], %61 {strides = array<i32>} : memref<1x64x32xf32, #tpu.memory_space<vmem>>, vector<1x8x32xf32>,
    %c1_i32 = arith.constant 1 : i32
    %c8_i32_27 = arith.constant 8 : i32
    %62 = arith.muli %c1_i32, %c8_i32_27 : i32
    %63 = tpu.assume_multiple %62, 8 : i32
    %64 = arith.index_cast %63 : i32 to index
    %c0_28 = arith.constant 0 : index
    %65 = vector.load %arg8[%64, %c0_28] : memref<64x128xf32, #tpu.memory_space<vmem>>, vector<8x128xf32>
    %66 = arith.truncf %50 : vector<8x32xf32> to vector<8x32xbf16>
    %cst_29 = arith.constant dense<0.000000e+00> : vector<8x128xf32>
    %67 = tpu.matmul %66, %11, %cst_29 {dimension_numbers = #tpu.dot_dimension_numbers<[1], [0], [0], [1], [0, 0, 1, 1], [], []>} : vector<8x32xbf16>, vector<32x128xbf16>, vector<8x128xf32> -> vector<8x128xf32>
    %68 = arith.addf %65, %67 : vector<8x128xf32>
    %69 = vector.extract_strided_slice %68 {offsets = [0, 0], sizes = [8, 64], strides = [1, 1]} : vector<8x128xf32> to vector<8x64xf32>
    %70 = arith.negf %69 : vector<8x64xf32>
    %71 = math.exp %70 : vector<8x64xf32>
    %cst_30 = arith.constant 1.000000e+00 : f32
    %72 = vector.broadcast %cst_30 : f32 to vector<8x64xf32>
    %73 = arith.addf %72, %71 : vector<8x64xf32>
    %74 = arith.divf %72, %73 : vector<8x64xf32>
    %75 = vector.extract_strided_slice %74 {offsets = [0, 0], sizes = [8, 32], strides = [1, 1]} : vector<8x64xf32> to vector<8x32xf32>
    %76 = vector.extract_strided_slice %74 {offsets = [0, 32], sizes = [8, 32], strides = [1, 1]} : vector<8x64xf32> to vector<8x32xf32>
    %77 = vector.extract_strided_slice %68 {offsets = [0, 64], sizes = [8, 32], strides = [1, 1]} : vector<8x128xf32> to vector<8x32xf32>
    %78 = math.tanh %77 : vector<8x32xf32>
    %79 = vector.extract_strided_slice %68 {offsets = [0, 96], sizes = [8, 32], strides = [1, 1]} : vector<8x128xf32> to vector<8x32xf32>
    %80 = arith.negf %79 : vector<8x32xf32>
    %81 = math.exp %80 : vector<8x32xf32>
    %cst_31 = arith.constant 1.000000e+00 : f32
    %82 = vector.broadcast %cst_31 : f32 to vector<8x32xf32>
    %83 = arith.addf %82, %81 : vector<8x32xf32>
    %84 = arith.divf %82, %83 : vector<8x32xf32>
    %85 = arith.mulf %76, %53 : vector<8x32xf32>
    %86 = arith.mulf %75, %78 : vector<8x32xf32>
    %87 = arith.addf %85, %86 : vector<8x32xf32>
    %88 = math.tanh %87 : vector<8x32xf32>
    %89 = arith.mulf %84, %88 : vector<8x32xf32>
    %90 = arith.addi %14, %c1_i32 : i32
    %91 = vector.broadcast %90 : i32 to vector<8x1xi32>
    %92 = arith.cmpi slt, %91, %13 : vector<8x1xi32>
    %93 = vector.shape_cast %92 : vector<8x1xi1> to vector<8x1xi1>
    %94 = vector.broadcast %93 : vector<8x1xi1> to vector<8x32xi1>
    %95 = arith.select %94, %89, %50 : vector<8x32xi1>, vector<8x32xf32>
    %96 = vector.shape_cast %92 : vector<8x1xi1> to vector<8x1xi1>
    %97 = vector.broadcast %96 : vector<8x1xi1> to vector<8x32xi1>
    %98 = arith.select %97, %87, %53 : vector<8x32xi1>, vector<8x32xf32>
    %cst_32 = arith.constant 0.000000e+00 : f32
    %99 = vector.shape_cast %92 : vector<8x1xi1> to vector<8x1xi1>
    %100 = vector.broadcast %99 : vector<8x1xi1> to vector<8x32xi1>
    %101 = vector.broadcast %cst_32 : f32 to vector<8x32xf32>
    %102 = arith.select %100, %89, %101 : vector<8x32xi1>, vector<8x32xf32>
    %c0_33 = arith.constant 0 : index
    %103 = arith.index_cast %63 : i32 to index
    %c0_34 = arith.constant 0 : index
    %104 = vector.load %arg7[%c0_33, %103, %c0_34] : memref<1x64x32xf32, #tpu.memory_space<vmem>>, vector<1x8x32xf32>
    %105 = vector.shape_cast %104 : vector<1x8x32xf32> to vector<8x32xf32>
    %106 = vector.shape_cast %102 : vector<8x32xf32> to vector<1x8x32xf32>
    tpu.vector_store %arg7[%c0_33, %103, %c0_34], %106 {strides = array<i32>} : memref<1x64x32xf32, #tpu.memory_space<vmem>>, vector<1x8x32xf32>,
    %c2_i32 = arith.constant 2 : i32
    %c8_i32_35 = arith.constant 8 : i32
    %107 = arith.muli %c2_i32, %c8_i32_35 : i32
    %108 = tpu.assume_multiple %107, 8 : i32
    %109 = arith.index_cast %108 : i32 to index
    %c0_36 = arith.constant 0 : index
    %110 = vector.load %arg8[%109, %c0_36] : memref<64x128xf32, #tpu.memory_space<vmem>>, vector<8x128xf32>
    %111 = arith.truncf %95 : vector<8x32xf32> to vector<8x32xbf16>
    %cst_37 = arith.constant dense<0.000000e+00> : vector<8x128xf32>
    %112 = tpu.matmul %111, %11, %cst_37 {dimension_numbers = #tpu.dot_dimension_numbers<[1], [0], [0], [1], [0, 0, 1, 1], [], []>} : vector<8x32xbf16>, vector<32x128xbf16>, vector<8x128xf32> -> vector<8x128xf32>
    %113 = arith.addf %110, %112 : vector<8x128xf32>
    %114 = vector.extract_strided_slice %113 {offsets = [0, 0], sizes = [8, 64], strides = [1, 1]} : vector<8x128xf32> to vector<8x64xf32>
    %115 = arith.negf %114 : vector<8x64xf32>
    %116 = math.exp %115 : vector<8x64xf32>
    %cst_38 = arith.constant 1.000000e+00 : f32
    %117 = vector.broadcast %cst_38 : f32 to vector<8x64xf32>
    %118 = arith.addf %117, %116 : vector<8x64xf32>
    %119 = arith.divf %117, %118 : vector<8x64xf32>
    %120 = vector.extract_strided_slice %119 {offsets = [0, 0], sizes = [8, 32], strides = [1, 1]} : vector<8x64xf32> to vector<8x32xf32>
    %121 = vector.extract_strided_slice %119 {offsets = [0, 32], sizes = [8, 32], strides = [1, 1]} : vector<8x64xf32> to vector<8x32xf32>
    %122 = vector.extract_strided_slice %113 {offsets = [0, 64], sizes = [8, 32], strides = [1, 1]} : vector<8x128xf32> to vector<8x32xf32>
    %123 = math.tanh %122 : vector<8x32xf32>
    %124 = vector.extract_strided_slice %113 {offsets = [0, 96], sizes = [8, 32], strides = [1, 1]} : vector<8x128xf32> to vector<8x32xf32>
    %125 = arith.negf %124 : vector<8x32xf32>
    %126 = math.exp %125 : vector<8x32xf32>
    %cst_39 = arith.constant 1.000000e+00 : f32
    %127 = vector.broadcast %cst_39 : f32 to vector<8x32xf32>
    %128 = arith.addf %127, %126 : vector<8x32xf32>
    %129 = arith.divf %127, %128 : vector<8x32xf32>
    %130 = arith.mulf %121, %98 : vector<8x32xf32>
    %131 = arith.mulf %120, %123 : vector<8x32xf32>
    %132 = arith.addf %130, %131 : vector<8x32xf32>
    %133 = math.tanh %132 : vector<8x32xf32>
    %134 = arith.mulf %129, %133 : vector<8x32xf32>
    %135 = arith.addi %14, %c2_i32 : i32
    %136 = vector.broadcast %135 : i32 to vector<8x1xi32>
    %137 = arith.cmpi slt, %136, %13 : vector<8x1xi32>
    %138 = vector.shape_cast %137 : vector<8x1xi1> to vector<8x1xi1>
    %139 = vector.broadcast %138 : vector<8x1xi1> to vector<8x32xi1>
    %140 = arith.select %139, %134, %95 : vector<8x32xi1>, vector<8x32xf32>
    %141 = vector.shape_cast %137 : vector<8x1xi1> to vector<8x1xi1>
    %142 = vector.broadcast %141 : vector<8x1xi1> to vector<8x32xi1>
    %143 = arith.select %142, %132, %98 : vector<8x32xi1>, vector<8x32xf32>
    %cst_40 = arith.constant 0.000000e+00 : f32
    %144 = vector.shape_cast %137 : vector<8x1xi1> to vector<8x1xi1>
    %145 = vector.broadcast %144 : vector<8x1xi1> to vector<8x32xi1>
    %146 = vector.broadcast %cst_40 : f32 to vector<8x32xf32>
    %147 = arith.select %145, %134, %146 : vector<8x32xi1>, vector<8x32xf32>
    %c0_41 = arith.constant 0 : index
    %148 = arith.index_cast %108 : i32 to index
    %c0_42 = arith.constant 0 : index
    %149 = vector.load %arg7[%c0_41, %148, %c0_42] : memref<1x64x32xf32, #tpu.memory_space<vmem>>, vector<1x8x32xf32>
    %150 = vector.shape_cast %149 : vector<1x8x32xf32> to vector<8x32xf32>
    %151 = vector.shape_cast %147 : vector<8x32xf32> to vector<1x8x32xf32>
    tpu.vector_store %arg7[%c0_41, %148, %c0_42], %151 {strides = array<i32>} : memref<1x64x32xf32, #tpu.memory_space<vmem>>, vector<1x8x32xf32>,
    %c3_i32 = arith.constant 3 : i32
    %c8_i32_43 = arith.constant 8 : i32
    %152 = arith.muli %c3_i32, %c8_i32_43 : i32
    %153 = tpu.assume_multiple %152, 8 : i32
    %154 = arith.index_cast %153 : i32 to index
    %c0_44 = arith.constant 0 : index
    %155 = vector.load %arg8[%154, %c0_44] : memref<64x128xf32, #tpu.memory_space<vmem>>, vector<8x128xf32>
    %156 = arith.truncf %140 : vector<8x32xf32> to vector<8x32xbf16>
    %cst_45 = arith.constant dense<0.000000e+00> : vector<8x128xf32>
    %157 = tpu.matmul %156, %11, %cst_45 {dimension_numbers = #tpu.dot_dimension_numbers<[1], [0], [0], [1], [0, 0, 1, 1], [], []>} : vector<8x32xbf16>, vector<32x128xbf16>, vector<8x128xf32> -> vector<8x128xf32>
    %158 = arith.addf %155, %157 : vector<8x128xf32>
    %159 = vector.extract_strided_slice %158 {offsets = [0, 0], sizes = [8, 64], strides = [1, 1]} : vector<8x128xf32> to vector<8x64xf32>
    %160 = arith.negf %159 : vector<8x64xf32>
    %161 = math.exp %160 : vector<8x64xf32>
    %cst_46 = arith.constant 1.000000e+00 : f32
    %162 = vector.broadcast %cst_46 : f32 to vector<8x64xf32>
    %163 = arith.addf %162, %161 : vector<8x64xf32>
    %164 = arith.divf %162, %163 : vector<8x64xf32>
    %165 = vector.extract_strided_slice %164 {offsets = [0, 0], sizes = [8, 32], strides = [1, 1]} : vector<8x64xf32> to vector<8x32xf32>
    %166 = vector.extract_strided_slice %164 {offsets = [0, 32], sizes = [8, 32], strides = [1, 1]} : vector<8x64xf32> to vector<8x32xf32>
    %167 = vector.extract_strided_slice %158 {offsets = [0, 64], sizes = [8, 32], strides = [1, 1]} : vector<8x128xf32> to vector<8x32xf32>
    %168 = math.tanh %167 : vector<8x32xf32>
    %169 = vector.extract_strided_slice %158 {offsets = [0, 96], sizes = [8, 32], strides = [1, 1]} : vector<8x128xf32> to vector<8x32xf32>
    %170 = arith.negf %169 : vector<8x32xf32>
    %171 = math.exp %170 : vector<8x32xf32>
    %cst_47 = arith.constant 1.000000e+00 : f32
    %172 = vector.broadcast %cst_47 : f32 to vector<8x32xf32>
    %173 = arith.addf %172, %171 : vector<8x32xf32>
    %174 = arith.divf %172, %173 : vector<8x32xf32>
    %175 = arith.mulf %166, %143 : vector<8x32xf32>
    %176 = arith.mulf %165, %168 : vector<8x32xf32>
    %177 = arith.addf %175, %176 : vector<8x32xf32>
    %178 = math.tanh %177 : vector<8x32xf32>
    %179 = arith.mulf %174, %178 : vector<8x32xf32>
    %180 = arith.addi %14, %c3_i32 : i32
    %181 = vector.broadcast %180 : i32 to vector<8x1xi32>
    %182 = arith.cmpi slt, %181, %13 : vector<8x1xi32>
    %183 = vector.shape_cast %182 : vector<8x1xi1> to vector<8x1xi1>
    %184 = vector.broadcast %183 : vector<8x1xi1> to vector<8x32xi1>
    %185 = arith.select %184, %179, %140 : vector<8x32xi1>, vector<8x32xf32>
    %186 = vector.shape_cast %182 : vector<8x1xi1> to vector<8x1xi1>
    %187 = vector.broadcast %186 : vector<8x1xi1> to vector<8x32xi1>
    %188 = arith.select %187, %177, %143 : vector<8x32xi1>, vector<8x32xf32>
    %cst_48 = arith.constant 0.000000e+00 : f32
    %189 = vector.shape_cast %182 : vector<8x1xi1> to vector<8x1xi1>
    %190 = vector.broadcast %189 : vector<8x1xi1> to vector<8x32xi1>
    %191 = vector.broadcast %cst_48 : f32 to vector<8x32xf32>
    %192 = arith.select %190, %179, %191 : vector<8x32xi1>, vector<8x32xf32>
    %c0_49 = arith.constant 0 : index
    %193 = arith.index_cast %153 : i32 to index
    %c0_50 = arith.constant 0 : index
    %194 = vector.load %arg7[%c0_49, %193, %c0_50] : memref<1x64x32xf32, #tpu.memory_space<vmem>>, vector<1x8x32xf32>
    %195 = vector.shape_cast %194 : vector<1x8x32xf32> to vector<8x32xf32>
    %196 = vector.shape_cast %192 : vector<8x32xf32> to vector<1x8x32xf32>
    tpu.vector_store %arg7[%c0_49, %193, %c0_50], %196 {strides = array<i32>} : memref<1x64x32xf32, #tpu.memory_space<vmem>>, vector<1x8x32xf32>,
    %c4_i32 = arith.constant 4 : i32
    %c8_i32_51 = arith.constant 8 : i32
    %197 = arith.muli %c4_i32, %c8_i32_51 : i32
    %198 = tpu.assume_multiple %197, 8 : i32
    %199 = arith.index_cast %198 : i32 to index
    %c0_52 = arith.constant 0 : index
    %200 = vector.load %arg8[%199, %c0_52] : memref<64x128xf32, #tpu.memory_space<vmem>>, vector<8x128xf32>
    %201 = arith.truncf %185 : vector<8x32xf32> to vector<8x32xbf16>
    %cst_53 = arith.constant dense<0.000000e+00> : vector<8x128xf32>
    %202 = tpu.matmul %201, %11, %cst_53 {dimension_numbers = #tpu.dot_dimension_numbers<[1], [0], [0], [1], [0, 0, 1, 1], [], []>} : vector<8x32xbf16>, vector<32x128xbf16>, vector<8x128xf32> -> vector<8x128xf32>
    %203 = arith.addf %200, %202 : vector<8x128xf32>
    %204 = vector.extract_strided_slice %203 {offsets = [0, 0], sizes = [8, 64], strides = [1, 1]} : vector<8x128xf32> to vector<8x64xf32>
    %205 = arith.negf %204 : vector<8x64xf32>
    %206 = math.exp %205 : vector<8x64xf32>
    %cst_54 = arith.constant 1.000000e+00 : f32
    %207 = vector.broadcast %cst_54 : f32 to vector<8x64xf32>
    %208 = arith.addf %207, %206 : vector<8x64xf32>
    %209 = arith.divf %207, %208 : vector<8x64xf32>
    %210 = vector.extract_strided_slice %209 {offsets = [0, 0], sizes = [8, 32], strides = [1, 1]} : vector<8x64xf32> to vector<8x32xf32>
    %211 = vector.extract_strided_slice %209 {offsets = [0, 32], sizes = [8, 32], strides = [1, 1]} : vector<8x64xf32> to vector<8x32xf32>
    %212 = vector.extract_strided_slice %203 {offsets = [0, 64], sizes = [8, 32], strides = [1, 1]} : vector<8x128xf32> to vector<8x32xf32>
    %213 = math.tanh %212 : vector<8x32xf32>
    %214 = vector.extract_strided_slice %203 {offsets = [0, 96], sizes = [8, 32], strides = [1, 1]} : vector<8x128xf32> to vector<8x32xf32>
    %215 = arith.negf %214 : vector<8x32xf32>
    %216 = math.exp %215 : vector<8x32xf32>
    %cst_55 = arith.constant 1.000000e+00 : f32
    %217 = vector.broadcast %cst_55 : f32 to vector<8x32xf32>
    %218 = arith.addf %217, %216 : vector<8x32xf32>
    %219 = arith.divf %217, %218 : vector<8x32xf32>
    %220 = arith.mulf %211, %188 : vector<8x32xf32>
    %221 = arith.mulf %210, %213 : vector<8x32xf32>
    %222 = arith.addf %220, %221 : vector<8x32xf32>
    %223 = math.tanh %222 : vector<8x32xf32>
    %224 = arith.mulf %219, %223 : vector<8x32xf32>
    %225 = arith.addi %14, %c4_i32 : i32
    %226 = vector.broadcast %225 : i32 to vector<8x1xi32>
    %227 = arith.cmpi slt, %226, %13 : vector<8x1xi32>
    %228 = vector.shape_cast %227 : vector<8x1xi1> to vector<8x1xi1>
    %229 = vector.broadcast %228 : vector<8x1xi1> to vector<8x32xi1>
    %230 = arith.select %229, %224, %185 : vector<8x32xi1>, vector<8x32xf32>
    %231 = vector.shape_cast %227 : vector<8x1xi1> to vector<8x1xi1>
    %232 = vector.broadcast %231 : vector<8x1xi1> to vector<8x32xi1>
    %233 = arith.select %232, %222, %188 : vector<8x32xi1>, vector<8x32xf32>
    %cst_56 = arith.constant 0.000000e+00 : f32
    %234 = vector.shape_cast %227 : vector<8x1xi1> to vector<8x1xi1>
    %235 = vector.broadcast %234 : vector<8x1xi1> to vector<8x32xi1>
    %236 = vector.broadcast %cst_56 : f32 to vector<8x32xf32>
    %237 = arith.select %235, %224, %236 : vector<8x32xi1>, vector<8x32xf32>
    %c0_57 = arith.constant 0 : index
    %238 = arith.index_cast %198 : i32 to index
    %c0_58 = arith.constant 0 : index
    %239 = vector.load %arg7[%c0_57, %238, %c0_58] : memref<1x64x32xf32, #tpu.memory_space<vmem>>, vector<1x8x32xf32>
    %240 = vector.shape_cast %239 : vector<1x8x32xf32> to vector<8x32xf32>
    %241 = vector.shape_cast %237 : vector<8x32xf32> to vector<1x8x32xf32>
    tpu.vector_store %arg7[%c0_57, %238, %c0_58], %241 {strides = array<i32>} : memref<1x64x32xf32, #tpu.memory_space<vmem>>, vector<1x8x32xf32>,
    %c5_i32 = arith.constant 5 : i32
    %c8_i32_59 = arith.constant 8 : i32
    %242 = arith.muli %c5_i32, %c8_i32_59 : i32
    %243 = tpu.assume_multiple %242, 8 : i32
    %244 = arith.index_cast %243 : i32 to index
    %c0_60 = arith.constant 0 : index
    %245 = vector.load %arg8[%244, %c0_60] : memref<64x128xf32, #tpu.memory_space<vmem>>, vector<8x128xf32>
    %246 = arith.truncf %230 : vector<8x32xf32> to vector<8x32xbf16>
    %cst_61 = arith.constant dense<0.000000e+00> : vector<8x128xf32>
    %247 = tpu.matmul %246, %11, %cst_61 {dimension_numbers = #tpu.dot_dimension_numbers<[1], [0], [0], [1], [0, 0, 1, 1], [], []>} : vector<8x32xbf16>, vector<32x128xbf16>, vector<8x128xf32> -> vector<8x128xf32>
    %248 = arith.addf %245, %247 : vector<8x128xf32>
    %249 = vector.extract_strided_slice %248 {offsets = [0, 0], sizes = [8, 64], strides = [1, 1]} : vector<8x128xf32> to vector<8x64xf32>
    %250 = arith.negf %249 : vector<8x64xf32>
    %251 = math.exp %250 : vector<8x64xf32>
    %cst_62 = arith.constant 1.000000e+00 : f32
    %252 = vector.broadcast %cst_62 : f32 to vector<8x64xf32>
    %253 = arith.addf %252, %251 : vector<8x64xf32>
    %254 = arith.divf %252, %253 : vector<8x64xf32>
    %255 = vector.extract_strided_slice %254 {offsets = [0, 0], sizes = [8, 32], strides = [1, 1]} : vector<8x64xf32> to vector<8x32xf32>
    %256 = vector.extract_strided_slice %254 {offsets = [0, 32], sizes = [8, 32], strides = [1, 1]} : vector<8x64xf32> to vector<8x32xf32>
    %257 = vector.extract_strided_slice %248 {offsets = [0, 64], sizes = [8, 32], strides = [1, 1]} : vector<8x128xf32> to vector<8x32xf32>
    %258 = math.tanh %257 : vector<8x32xf32>
    %259 = vector.extract_strided_slice %248 {offsets = [0, 96], sizes = [8, 32], strides = [1, 1]} : vector<8x128xf32> to vector<8x32xf32>
    %260 = arith.negf %259 : vector<8x32xf32>
    %261 = math.exp %260 : vector<8x32xf32>
    %cst_63 = arith.constant 1.000000e+00 : f32
    %262 = vector.broadcast %cst_63 : f32 to vector<8x32xf32>
    %263 = arith.addf %262, %261 : vector<8x32xf32>
    %264 = arith.divf %262, %263 : vector<8x32xf32>
    %265 = arith.mulf %256, %233 : vector<8x32xf32>
    %266 = arith.mulf %255, %258 : vector<8x32xf32>
    %267 = arith.addf %265, %266 : vector<8x32xf32>
    %268 = math.tanh %267 : vector<8x32xf32>
    %269 = arith.mulf %264, %268 : vector<8x32xf32>
    %270 = arith.addi %14, %c5_i32 : i32
    %271 = vector.broadcast %270 : i32 to vector<8x1xi32>
    %272 = arith.cmpi slt, %271, %13 : vector<8x1xi32>
    %273 = vector.shape_cast %272 : vector<8x1xi1> to vector<8x1xi1>
    %274 = vector.broadcast %273 : vector<8x1xi1> to vector<8x32xi1>
    %275 = arith.select %274, %269, %230 : vector<8x32xi1>, vector<8x32xf32>
    %276 = vector.shape_cast %272 : vector<8x1xi1> to vector<8x1xi1>
    %277 = vector.broadcast %276 : vector<8x1xi1> to vector<8x32xi1>
    %278 = arith.select %277, %267, %233 : vector<8x32xi1>, vector<8x32xf32>
    %cst_64 = arith.constant 0.000000e+00 : f32
    %279 = vector.shape_cast %272 : vector<8x1xi1> to vector<8x1xi1>
    %280 = vector.broadcast %279 : vector<8x1xi1> to vector<8x32xi1>
    %281 = vector.broadcast %cst_64 : f32 to vector<8x32xf32>
    %282 = arith.select %280, %269, %281 : vector<8x32xi1>, vector<8x32xf32>
    %c0_65 = arith.constant 0 : index
    %283 = arith.index_cast %243 : i32 to index
    %c0_66 = arith.constant 0 : index
    %284 = vector.load %arg7[%c0_65, %283, %c0_66] : memref<1x64x32xf32, #tpu.memory_space<vmem>>, vector<1x8x32xf32>
    %285 = vector.shape_cast %284 : vector<1x8x32xf32> to vector<8x32xf32>
    %286 = vector.shape_cast %282 : vector<8x32xf32> to vector<1x8x32xf32>
    tpu.vector_store %arg7[%c0_65, %283, %c0_66], %286 {strides = array<i32>} : memref<1x64x32xf32, #tpu.memory_space<vmem>>, vector<1x8x32xf32>,
    %c6_i32 = arith.constant 6 : i32
    %c8_i32_67 = arith.constant 8 : i32
    %287 = arith.muli %c6_i32, %c8_i32_67 : i32
    %288 = tpu.assume_multiple %287, 8 : i32
    %289 = arith.index_cast %288 : i32 to index
    %c0_68 = arith.constant 0 : index
    %290 = vector.load %arg8[%289, %c0_68] : memref<64x128xf32, #tpu.memory_space<vmem>>, vector<8x128xf32>
    %291 = arith.truncf %275 : vector<8x32xf32> to vector<8x32xbf16>
    %cst_69 = arith.constant dense<0.000000e+00> : vector<8x128xf32>
    %292 = tpu.matmul %291, %11, %cst_69 {dimension_numbers = #tpu.dot_dimension_numbers<[1], [0], [0], [1], [0, 0, 1, 1], [], []>} : vector<8x32xbf16>, vector<32x128xbf16>, vector<8x128xf32> -> vector<8x128xf32>
    %293 = arith.addf %290, %292 : vector<8x128xf32>
    %294 = vector.extract_strided_slice %293 {offsets = [0, 0], sizes = [8, 64], strides = [1, 1]} : vector<8x128xf32> to vector<8x64xf32>
    %295 = arith.negf %294 : vector<8x64xf32>
    %296 = math.exp %295 : vector<8x64xf32>
    %cst_70 = arith.constant 1.000000e+00 : f32
    %297 = vector.broadcast %cst_70 : f32 to vector<8x64xf32>
    %298 = arith.addf %297, %296 : vector<8x64xf32>
    %299 = arith.divf %297, %298 : vector<8x64xf32>
    %300 = vector.extract_strided_slice %299 {offsets = [0, 0], sizes = [8, 32], strides = [1, 1]} : vector<8x64xf32> to vector<8x32xf32>
    %301 = vector.extract_strided_slice %299 {offsets = [0, 32], sizes = [8, 32], strides = [1, 1]} : vector<8x64xf32> to vector<8x32xf32>
    %302 = vector.extract_strided_slice %293 {offsets = [0, 64], sizes = [8, 32], strides = [1, 1]} : vector<8x128xf32> to vector<8x32xf32>
    %303 = math.tanh %302 : vector<8x32xf32>
    %304 = vector.extract_strided_slice %293 {offsets = [0, 96], sizes = [8, 32], strides = [1, 1]} : vector<8x128xf32> to vector<8x32xf32>
    %305 = arith.negf %304 : vector<8x32xf32>
    %306 = math.exp %305 : vector<8x32xf32>
    %cst_71 = arith.constant 1.000000e+00 : f32
    %307 = vector.broadcast %cst_71 : f32 to vector<8x32xf32>
    %308 = arith.addf %307, %306 : vector<8x32xf32>
    %309 = arith.divf %307, %308 : vector<8x32xf32>
    %310 = arith.mulf %301, %278 : vector<8x32xf32>
    %311 = arith.mulf %300, %303 : vector<8x32xf32>
    %312 = arith.addf %310, %311 : vector<8x32xf32>
    %313 = math.tanh %312 : vector<8x32xf32>
    %314 = arith.mulf %309, %313 : vector<8x32xf32>
    %315 = arith.addi %14, %c6_i32 : i32
    %316 = vector.broadcast %315 : i32 to vector<8x1xi32>
    %317 = arith.cmpi slt, %316, %13 : vector<8x1xi32>
    %318 = vector.shape_cast %317 : vector<8x1xi1> to vector<8x1xi1>
    %319 = vector.broadcast %318 : vector<8x1xi1> to vector<8x32xi1>
    %320 = arith.select %319, %314, %275 : vector<8x32xi1>, vector<8x32xf32>
    %321 = vector.shape_cast %317 : vector<8x1xi1> to vector<8x1xi1>
    %322 = vector.broadcast %321 : vector<8x1xi1> to vector<8x32xi1>
    %323 = arith.select %322, %312, %278 : vector<8x32xi1>, vector<8x32xf32>
    %cst_72 = arith.constant 0.000000e+00 : f32
    %324 = vector.shape_cast %317 : vector<8x1xi1> to vector<8x1xi1>
    %325 = vector.broadcast %324 : vector<8x1xi1> to vector<8x32xi1>
    %326 = vector.broadcast %cst_72 : f32 to vector<8x32xf32>
    %327 = arith.select %325, %314, %326 : vector<8x32xi1>, vector<8x32xf32>
    %c0_73 = arith.constant 0 : index
    %328 = arith.index_cast %288 : i32 to index
    %c0_74 = arith.constant 0 : index
    %329 = vector.load %arg7[%c0_73, %328, %c0_74] : memref<1x64x32xf32, #tpu.memory_space<vmem>>, vector<1x8x32xf32>
    %330 = vector.shape_cast %329 : vector<1x8x32xf32> to vector<8x32xf32>
    %331 = vector.shape_cast %327 : vector<8x32xf32> to vector<1x8x32xf32>
    tpu.vector_store %arg7[%c0_73, %328, %c0_74], %331 {strides = array<i32>} : memref<1x64x32xf32, #tpu.memory_space<vmem>>, vector<1x8x32xf32>,
    %c7_i32 = arith.constant 7 : i32
    %c8_i32_75 = arith.constant 8 : i32
    %332 = arith.muli %c7_i32, %c8_i32_75 : i32
    %333 = tpu.assume_multiple %332, 8 : i32
    %334 = arith.index_cast %333 : i32 to index
    %c0_76 = arith.constant 0 : index
    %335 = vector.load %arg8[%334, %c0_76] : memref<64x128xf32, #tpu.memory_space<vmem>>, vector<8x128xf32>
    %336 = arith.truncf %320 : vector<8x32xf32> to vector<8x32xbf16>
    %cst_77 = arith.constant dense<0.000000e+00> : vector<8x128xf32>
    %337 = tpu.matmul %336, %11, %cst_77 {dimension_numbers = #tpu.dot_dimension_numbers<[1], [0], [0], [1], [0, 0, 1, 1], [], []>} : vector<8x32xbf16>, vector<32x128xbf16>, vector<8x128xf32> -> vector<8x128xf32>
    %338 = arith.addf %335, %337 : vector<8x128xf32>
    %339 = vector.extract_strided_slice %338 {offsets = [0, 0], sizes = [8, 64], strides = [1, 1]} : vector<8x128xf32> to vector<8x64xf32>
    %340 = arith.negf %339 : vector<8x64xf32>
    %341 = math.exp %340 : vector<8x64xf32>
    %cst_78 = arith.constant 1.000000e+00 : f32
    %342 = vector.broadcast %cst_78 : f32 to vector<8x64xf32>
    %343 = arith.addf %342, %341 : vector<8x64xf32>
    %344 = arith.divf %342, %343 : vector<8x64xf32>
    %345 = vector.extract_strided_slice %344 {offsets = [0, 0], sizes = [8, 32], strides = [1, 1]} : vector<8x64xf32> to vector<8x32xf32>
    %346 = vector.extract_strided_slice %344 {offsets = [0, 32], sizes = [8, 32], strides = [1, 1]} : vector<8x64xf32> to vector<8x32xf32>
    %347 = vector.extract_strided_slice %338 {offsets = [0, 64], sizes = [8, 32], strides = [1, 1]} : vector<8x128xf32> to vector<8x32xf32>
    %348 = math.tanh %347 : vector<8x32xf32>
    %349 = vector.extract_strided_slice %338 {offsets = [0, 96], sizes = [8, 32], strides = [1, 1]} : vector<8x128xf32> to vector<8x32xf32>
    %350 = arith.negf %349 : vector<8x32xf32>
    %351 = math.exp %350 : vector<8x32xf32>
    %cst_79 = arith.constant 1.000000e+00 : f32
    %352 = vector.broadcast %cst_79 : f32 to vector<8x32xf32>
    %353 = arith.addf %352, %351 : vector<8x32xf32>
    %354 = arith.divf %352, %353 : vector<8x32xf32>
    %355 = arith.mulf %346, %323 : vector<8x32xf32>
    %356 = arith.mulf %345, %348 : vector<8x32xf32>
    %357 = arith.addf %355, %356 : vector<8x32xf32>
    %358 = math.tanh %357 : vector<8x32xf32>
    %359 = arith.mulf %354, %358 : vector<8x32xf32>
    %360 = arith.addi %14, %c7_i32 : i32
    %361 = vector.broadcast %360 : i32 to vector<8x1xi32>
    %362 = arith.cmpi slt, %361, %13 : vector<8x1xi32>
    %363 = vector.shape_cast %362 : vector<8x1xi1> to vector<8x1xi1>
    %364 = vector.broadcast %363 : vector<8x1xi1> to vector<8x32xi1>
    %365 = arith.select %364, %359, %320 : vector<8x32xi1>, vector<8x32xf32>
    %366 = vector.shape_cast %362 : vector<8x1xi1> to vector<8x1xi1>
    %367 = vector.broadcast %366 : vector<8x1xi1> to vector<8x32xi1>
    %368 = arith.select %367, %357, %323 : vector<8x32xi1>, vector<8x32xf32>
    %cst_80 = arith.constant 0.000000e+00 : f32
    %369 = vector.shape_cast %362 : vector<8x1xi1> to vector<8x1xi1>
    %370 = vector.broadcast %369 : vector<8x1xi1> to vector<8x32xi1>
    %371 = vector.broadcast %cst_80 : f32 to vector<8x32xf32>
    %372 = arith.select %370, %359, %371 : vector<8x32xi1>, vector<8x32xf32>
    %c0_81 = arith.constant 0 : index
    %373 = arith.index_cast %333 : i32 to index
    %c0_82 = arith.constant 0 : index
    %374 = vector.load %arg7[%c0_81, %373, %c0_82] : memref<1x64x32xf32, #tpu.memory_space<vmem>>, vector<1x8x32xf32>
    %375 = vector.shape_cast %374 : vector<1x8x32xf32> to vector<8x32xf32>
    %376 = vector.shape_cast %372 : vector<8x32xf32> to vector<1x8x32xf32>
    tpu.vector_store %arg7[%c0_81, %373, %c0_82], %376 {strides = array<i32>} : memref<1x64x32xf32, #tpu.memory_space<vmem>>, vector<1x8x32xf32>,
    %c8_i32_83 = arith.constant 8 : i32
    %c0_84 = arith.constant 0 : index
    %c0_85 = arith.constant 0 : index
    %377 = vector.load %arg9[%c0_84, %c0_85] : memref<8x32xf32, #tpu.memory_space<vmem>>, vector<8x32xf32>
    tpu.vector_store %arg9[%c0_84, %c0_85], %365 {strides = array<i32>} : memref<8x32xf32, #tpu.memory_space<vmem>>, vector<8x32xf32>,
    %c0_86 = arith.constant 0 : index
    %c0_87 = arith.constant 0 : index
    %378 = vector.load %arg10[%c0_86, %c0_87] : memref<8x32xf32, #tpu.memory_space<vmem>>, vector<8x32xf32>
    tpu.vector_store %arg10[%c0_86, %c0_87], %368 {strides = array<i32>} : memref<8x32xf32, #tpu.memory_space<vmem>>, vector<8x32xf32>,
    return
  }
  func.func @transform_0(%arg0: i32, %arg1: i32) -> (i32, i32, i32) {
    %c0_i32 = arith.constant 0 : i32
    %c0_i32_0 = arith.constant 0 : i32
    return %arg0, %arg1, %c0_i32 : i32, i32, i32
  }
  func.func @transform_1(%arg0: i32, %arg1: i32) -> (i32, i32, i32) {
    %c0_i32 = arith.constant 0 : i32
    %c0_i32_0 = arith.constant 0 : i32
    %c0_i32_1 = arith.constant 0 : i32
    return %arg0, %c0_i32, %c0_i32_0 : i32, i32, i32
  }
  func.func @transform_2(%arg0: i32, %arg1: i32) -> (i32, i32) {
    %c0_i32 = arith.constant 0 : i32
    %c0_i32_0 = arith.constant 0 : i32
    %c0_i32_1 = arith.constant 0 : i32
    return %c0_i32, %c0_i32_0 : i32, i32
  }
  func.func @transform_3(%arg0: i32, %arg1: i32) -> (i32, i32) {
    %c0_i32 = arith.constant 0 : i32
    %c0_i32_0 = arith.constant 0 : i32
    %c0_i32_1 = arith.constant 0 : i32
    return %c0_i32, %c0_i32_0 : i32, i32
  }
  func.func @transform_4(%arg0: i32, %arg1: i32) -> (i32, i32) {
    %c0_i32 = arith.constant 0 : i32
    %c0_i32_0 = arith.constant 0 : i32
    %c0_i32_1 = arith.constant 0 : i32
    return %c0_i32, %c0_i32_0 : i32, i32
  }
  func.func @transform_5(%arg0: i32, %arg1: i32) -> (i32, i32, i32) {
    %c0_i32 = arith.constant 0 : i32
    %c0_i32_0 = arith.constant 0 : i32
    return %arg0, %arg1, %c0_i32 : i32, i32, i32
  }
}

</mosaic_0001>

<llo_original>
// kernel: tpu_custom_call.1
$region0: #{tpu_custom_call.1}
  #allocation0 [shape = 'u32[]', space=smem, size = 0x4, offset = 0x4, fixed_abs, tag = 'smem constant byte address 0x4 - core index']
  #allocation1 [shape = 'u32[144,128]{1,0:T(1,128)}', space=vmem, size = 0x12000, scoped, tag = 'internal scratch']
  #allocation2 [shape = 'f32[64,128]{1,0:T(8,128)}', space=vmem, size = 0x8000, scoped, tag = 'scratch operand']
  #allocation3 [shape = 'f32[8,32]{1,0:T(8,128)}', space=vmem, size = 0x1000, scoped, tag = 'scratch operand']
  #allocation4 [shape = 'f32[8,32]{1,0:T(8,128)}', space=vmem, size = 0x1000, scoped, tag = 'scratch operand']
  %s0 = inlined_call_operand.vmem [shape: bf16[1,64,32], index: 0, kind: input, shape index: {}]
  %s1 = inlined_call_operand.vmem [shape: s32[1,8,1], index: 1, kind: input, shape index: {}]
  %s2 = inlined_call_operand.vmem [shape: bf16[32,128], index: 2, kind: input, shape index: {}]
  %s3 = inlined_call_operand.vmem [shape: bf16[32,128], index: 3, kind: input, shape index: {}]
  %s4 = inlined_call_operand.vmem [shape: f32[1,128], index: 4, kind: input, shape index: {}]
  %s5 = inlined_call_operand.vmem [shape: f32[1,64,32], index: 5, kind: output, shape index: {}]
  %s6 = sld [smem:[#allocation0]]
  $region34: #{tpu_custom_call.1} parent=0
    _
  %s8 = ssub.s32 1, %s6
  %s9 = scalar_select 0, %s8, %s6
  // Predicated region
  $region2: #{tpu_custom_call.1} parent=0 // pred_check
    _
  $region3: #{tpu_custom_call.1} parent=0 // pred_check_branch
    %11 = sbr.rel (0) target = $region5
  $region4: #{tpu_custom_call.1} parent=0 // pred_region
    _
  $region5: #{tpu_custom_call.1} parent=0 // pred_fallthru
    _
  // Predicated region
  $region6: #{tpu_custom_call.1} parent=0 // pred_check
    _
  $region7: #{tpu_custom_call.1} parent=0 // pred_check_branch
    %13 = sbr.rel (0) target = $region9
  $region8: #{tpu_custom_call.1} parent=0 // pred_region
    _
  $region9: #{tpu_custom_call.1} parent=0 // pred_fallthru
    _
  // Predicated region
  $region10: #{tpu_custom_call.1} parent=0 // pred_check
    _
  $region11: #{tpu_custom_call.1} parent=0 // pred_check_branch
    %15 = sbr.rel (0) target = $region13
  $region12: #{tpu_custom_call.1} parent=0 // pred_region
    _
  $region13: #{tpu_custom_call.1} parent=0 // pred_fallthru
    _
  // Predicated region
  $region14: #{tpu_custom_call.1} parent=0 // pred_check
    _
  $region15: #{tpu_custom_call.1} parent=0 // pred_check_branch
    %17 = sbr.rel (0) target = $region17
  $region16: #{tpu_custom_call.1} parent=0 // pred_region
    _
  $region17: #{tpu_custom_call.1} parent=0 // pred_fallthru
    _
  // Predicated region
  $region18: #{tpu_custom_call.1} parent=0 // pred_check
    _
  $region19: #{tpu_custom_call.1} parent=0 // pred_check_branch
    %19 = sbr.rel (0) target = $region21
  $region20: #{tpu_custom_call.1} parent=0 // pred_region
    _
  $region21: #{tpu_custom_call.1} parent=0 // pred_fallthru
    _
  %p21 = scmp.eq.s32.totalorder 0, 0
  // Predicated region
  $region22: #{tpu_custom_call.1} parent=0 // pred_check
    %p22 = pneg %p21
  $region23: #{tpu_custom_call.1} parent=0 // pred_check_branch
    %24 = sbr.rel (%p22) target = $region25
  $region24: #{tpu_custom_call.1} parent=0 // pred_region
    %vm25 = vcmask 261120
    %26 = vst.msk [vmem:[#allocation3] sm:$0xff] %vm25, 0.0
    %27 = vst.msk [vmem:[#allocation4] sm:$0xff] %vm25, 0.0
  $region25: #{tpu_custom_call.1} parent=0 // pred_fallthru
    _
  %v28 = vld [vmem:[%s0] sm:$0xf]
  %v29 = vld [vmem:[%s0 + $0x4] sm:$0xf]
  %v30 = vld [vmem:[%s0 + $0x8] sm:$0xf]
  %v31 = vld [vmem:[%s0 + $0xc] sm:$0xf]
  %v32 = vld [vmem:[%s0 + $0x10] sm:$0xf]
  %v33 = vld [vmem:[%s0 + $0x14] sm:$0xf]
  %v34 = vld [vmem:[%s0 + $0x18] sm:$0xf]
  %v35 = vld [vmem:[%s0 + $0x1c] sm:$0xf]
  %v36 = vld [vmem:[%s2] sm:$0xf]
  %v37 = vld [vmem:[%s2 + $0x4] sm:$0xf]
  %v38 = vld [vmem:[%s2 + $0x8] sm:$0xf]
  %v39 = vld [vmem:[%s2 + $0xc] sm:$0xf]
  %v40 = vld [vmem:[%s4] sm:$0x1]
  %v42 = vlaneseq
  %v43 = vshrl.u32 %v42, 7
  %v44 = vsub.s32 0, %v43
  %v45 = vrot.slane %v40, %v44
  %v55 = vunpack.c.l.b16 %v28
  %v56 = vunpack.c.l.b16 %v29
  %v57 = vunpack.c.l.b16 %v30
  %v58 = vunpack.c.l.b16 %v31
  %v59 = vunpack.c.l.b16 %v32
  %v60 = vunpack.c.l.b16 %v33
  %v61 = vunpack.c.l.b16 %v34
  %v62 = vunpack.c.l.b16 %v35
  %v63 = vpack.c.b16 %v56, %v55
  %v64 = vpack.c.b16 %v58, %v57
  %v65 = vpack.c.b16 %v60, %v59
  %v66 = vpack.c.b16 %v62, %v61
  %v71 = vunpack.c.l.b16 %v36
  %v72 = vunpack.c.l.b16 %v37
  %v73 = vunpack.c.l.b16 %v38
  %v74 = vunpack.c.l.b16 %v39
  %v75 = vpack.c.b16 %v72, %v71
  %v76 = vpack.c.b16 %v74, %v73
  %vm79 = vcmask 261120
  %v81 = vsel %vm79, %v63, 0
  %v84 = vsel %vm79, %v64, 0
  %v87 = vsel %vm79, %v65, 0
  %v90 = vsel %vm79, %v66, 0
  %92 = vmatprep.subr.bf16.mxu0 0
  %93 = vmatpush1.bf16.msra.mxu0 0
  %94 = vmatprep.subr.bf16.mxu0 0
  %95 = vmatpush1.bf16.msra.mxu0 0
  %96 = vmatprep.subr.bf16.mxu0 0
  %97 = vmatpush1.bf16.msra.mxu0 0
  %98 = vmatprep.subr.bf16.mxu0 0
  %99 = vmatpush1.bf16.msra.mxu0 0
  %100 = vmatprep.subr.bf16.mxu0 0
  %101 = vmatpush1.bf16.msra.mxu0 0
  %102 = vmatprep.subr.bf16.mxu0 0
  %103 = vmatpush1.bf16.msra.mxu0 0
  %104 = vmatprep.subr.bf16.mxu0 0
  %105 = vmatpush1.bf16.msra.mxu0 %v76
  %106 = vmatprep.subr.bf16.mxu0 0
  %107 = vmatpush1.bf16.msra.mxu0 %v75
  %108 = vmatprep.subr.bf16.mxu0 0
  %109 = vmatpush2.bf16.msra.mxu0 0
  %110 = vmatprep.subr.bf16.mxu0 0
  %111 = vmatpush2.bf16.msra.mxu0 0
  %112 = vmatprep.subr.bf16.mxu0 0
  %113 = vmatpush2.bf16.msra.mxu0 0
  %114 = vmatprep.subr.bf16.mxu0 0
  %115 = vmatpush2.bf16.msra.mxu0 0
  %116 = vmatprep.subr.bf16.mxu0 0
  %117 = vmatpush2.bf16.msra.mxu0 0
  %118 = vmatprep.subr.bf16.mxu0 0
  %119 = vmatpush2.bf16.msra.mxu0 0
  %120 = vmatprep.subr.bf16.mxu0 0
  %121 = vmatpush2.bf16.msra.mxu0 0
  %122 = vmatprep.subr.bf16.mxu0 0
  %123 = vmatpush2.bf16.msra.mxu0 0
  %124 = vmatprep.mubr.bf16.mxu0 0
  %125 = vmatmul.mubr.bf16.gmra.mxu0 %v81
  %v126 = vpop.f32.mrf.mxu0
  %v127 = vadd.f32 %v45, %v126
  %v128 = vpop.f32.mrf.mxu0
  %v129 = vpop.f32.mrf.mxu0
  %v130 = vadd.f32 %v45, %v129
  %v131 = vpop.f32.mrf.mxu0
  %132 = vmatprep.mubr.bf16.mxu0 0
  %133 = vmatmul.mubr.bf16.gmra.mxu0 %v84
  %v134 = vpop.f32.mrf.mxu0
  %v135 = vadd.f32 %v45, %v134
  %v136 = vpop.f32.mrf.mxu0
  %v137 = vpop.f32.mrf.mxu0
  %v138 = vadd.f32 %v45, %v137
  %v139 = vpop.f32.mrf.mxu0
  %140 = vmatprep.mubr.bf16.mxu0 0
  %141 = vmatmul.mubr.bf16.gmra.mxu0 %v87
  %v142 = vpop.f32.mrf.mxu0
  %v143 = vadd.f32 %v45, %v142
  %v144 = vpop.f32.mrf.mxu0
  %v145 = vpop.f32.mrf.mxu0
  %v146 = vadd.f32 %v45, %v145
  %v147 = vpop.f32.mrf.mxu0
  %148 = vmatprep.mubr.bf16.mxu0 0
  %149 = vmatmul.mubr.bf16.gmra.mxu0 %v90
  %v150 = vpop.f32.mrf.mxu0
  %v151 = vadd.f32 %v45, %v150
  %v152 = vpop.f32.mrf.mxu0
  %v153 = vpop.f32.mrf.mxu0
  %v154 = vadd.f32 %v45, %v153
  %v155 = vpop.f32.mrf.mxu0
  %156 = vdwg.mxu0
  %157 = vst [vmem:[#allocation2] sm:$0xff] %v127
  %158 = vst [vmem:[#allocation2 + $0x8] sm:$0xff] %v130
  %159 = vst [vmem:[#allocation2 + $0x10] sm:$0xff] %v135
  %160 = vst [vmem:[#allocation2 + $0x18] sm:$0xff] %v138
  %161 = vst [vmem:[#allocation2 + $0x20] sm:$0xff] %v143
  %162 = vst [vmem:[#allocation2 + $0x28] sm:$0xff] %v146
  %163 = vst [vmem:[#allocation2 + $0x30] sm:$0xff] %v151
  %164 = vst [vmem:[#allocation2 + $0x38] sm:$0xff] %v154
  %v165 = vld [vmem:[%s3] sm:$0xf]
  %v166 = vld [vmem:[%s3 + $0x4] sm:$0xf]
  %v167 = vld [vmem:[%s3 + $0x8] sm:$0xf]
  %v168 = vld [vmem:[%s3 + $0xc] sm:$0xf]
  %v169 = vld [vmem:[%s1] sm:$0xff]
  %s170 = smul.u32 0, 8
  %v171 = vld [vmem:[#allocation3] sm:$0xff]
  %v172 = vld [vmem:[#allocation4] sm:$0xff]
  %v173 = vld [vmem:[#allocation2] sm:$0xff]
  %v174 = vpack.c.bf16 %v171, %v171
  %v179 = vunpack.c.l.b16 %v165
  %v180 = vunpack.c.l.b16 %v166
  %v181 = vunpack.c.l.b16 %v167
  %v182 = vunpack.c.l.b16 %v168
  %v183 = vpack.c.b16 %v180, %v179
  %v184 = vpack.c.b16 %v182, %v181
  %v188 = vsel %vm79, %v174, 0
  %190 = vmatprep.subr.bf16.mxu0 0
  %191 = vmatpush1.bf16.msra.mxu0 0
  %192 = vmatprep.subr.bf16.mxu0 0
  %193 = vmatpush1.bf16.msra.mxu0 0
  %194 = vmatprep.subr.bf16.mxu0 0
  %195 = vmatpush1.bf16.msra.mxu0 0
  %196 = vmatprep.subr.bf16.mxu0 0
  %197 = vmatpush1.bf16.msra.mxu0 0
  %198 = vmatprep.subr.bf16.mxu0 0
  %199 = vmatpush1.bf16.msra.mxu0 0
  %200 = vmatprep.subr.bf16.mxu0 0
  %201 = vmatpush1.bf16.msra.mxu0 0
  %202 = vmatprep.subr.bf16.mxu0 0
  %203 = vmatpush1.bf16.msra.mxu0 %v184
  %204 = vmatprep.subr.bf16.mxu0 0
  %205 = vmatpush1.bf16.msra.mxu0 %v183
  %206 = vmatprep.subr.bf16.mxu0 0
  %207 = vmatpush2.bf16.msra.mxu0 0
  %208 = vmatprep.subr.bf16.mxu0 0
  %209 = vmatpush2.bf16.msra.mxu0 0
  %210 = vmatprep.subr.bf16.mxu0 0
  %211 = vmatpush2.bf16.msra.mxu0 0
  %212 = vmatprep.subr.bf16.mxu0 0
  %213 = vmatpush2.bf16.msra.mxu0 0
  %214 = vmatprep.subr.bf16.mxu0 0
  %215 = vmatpush2.bf16.msra.mxu0 0
  %216 = vmatprep.subr.bf16.mxu0 0
  %217 = vmatpush2.bf16.msra.mxu0 0
  %218 = vmatprep.subr.bf16.mxu0 0
  %219 = vmatpush2.bf16.msra.mxu0 0
  %220 = vmatprep.subr.bf16.mxu0 0
  %221 = vmatpush2.bf16.msra.mxu0 0
  %222 = vmatprep.mubr.bf16.mxu0 0
  %223 = vmatmul.mubr.bf16.gmra.mxu0 %v188
  %v224 = vpop.f32.mrf.mxu0
  %v225 = vadd.f32 0.0, %v224
  %v226 = vpop.f32.mrf.mxu0
  %v227 = vpop.f32.mrf.mxu0
  %v228 = vpop.f32.mrf.mxu0
  %229 = vdwg.mxu0
  %v230 = vadd.f32 %v173, %v225
  %v231 = vxor.u32 %v230, 2147483648
  %v232 = vmul.f32 %v231, 1.442695
  %v233 = vpow.pop %v232
  %v234 = vadd.f32 %v233, 1.0
  %v235 = vrcp.pop %v234
  %v236 = vmul.f32 1.0, %v235
  %v237 = vtanh.pop %v230
  %239 = vrot.lane.b32.xlu0 %v172, 32
  %v240 = vpop.permute.xlu0 %239
  %v242 = vmul.f32 %v236, %v240
  %244 = vrot.lane.b32.xlu0 %v237, 64
  %v245 = vpop.permute.xlu0 %244
  %v247 = vmul.f32 %v236, %v245
  %249 = vrot.lane.b32.xlu0 %v247, 32
  %v250 = vpop.permute.xlu0 %249
  %v252 = vadd.f32 %v242, %v250
  %v253 = vtanh.pop %v252
  %255 = vrot.lane.b32.xlu0 %v253, 64
  %v256 = vpop.permute.xlu0 %255
  %v258 = vmul.f32 %v236, %v256
  %v259 = vstv %s170
  %vm260 = vcmp.lt.s32.totalorder %v259, %v169
  %v261 = vsel %vm260, 1, 0
  %262 = vset.pattern.permute.xlu0 0
  %263 = vperm.xlu0 %262, %v261
  %v264 = vpop.permute.xlu0 %263
  %vm265 = vcmp.eq.s32.totalorder %v264, 1
  %267 = vrot.lane.b32.xlu0 %v171, 96
  %v268 = vpop.permute.xlu0 %267
  %v270 = vsel %vm265, %v258, %v268
  %v271 = vsel %vm265, %v252, %v240
  %v272 = vsel %vm265, %v258, 0.0
  %274 = vrot.lane.b32.xlu0 %v272, 32
  %v275 = vpop.permute.xlu0 %274
  %277 = vst.msk [vmem:[%s5] sm:$0xff] %vm79, %v275
  %s278 = scalar_lea.vmem [#allocation2], 8
  %v279 = vld [vmem:[%s278] sm:$0xff]
  %v280 = vpack.c.bf16 %v270, %v270
  %282 = vrot.lane.b32.xlu0 %v280, 32
  %v283 = vpop.permute.xlu0 %282
  %v285 = vsel %vm79, %v283, 0
  %287 = vmatprep.subr.bf16.mxu0 0
  %288 = vmatpush1.bf16.msra.mxu0 0
  %289 = vmatprep.subr.bf16.mxu0 0
  %290 = vmatpush1.bf16.msra.mxu0 0
  %291 = vmatprep.subr.bf16.mxu0 0
  %292 = vmatpush1.bf16.msra.mxu0 0
  %293 = vmatprep.subr.bf16.mxu0 0
  %294 = vmatpush1.bf16.msra.mxu0 0
  %295 = vmatprep.subr.bf16.mxu0 0
  %296 = vmatpush1.bf16.msra.mxu0 0
  %297 = vmatprep.subr.bf16.mxu0 0
  %298 = vmatpush1.bf16.msra.mxu0 0
  %299 = vmatprep.subr.bf16.mxu0 0
  %300 = vmatpush1.bf16.msra.mxu0 %v184
  %301 = vmatprep.subr.bf16.mxu0 0
  %302 = vmatpush1.bf16.msra.mxu0 %v183
  %303 = vmatprep.subr.bf16.mxu0 0
  %304 = vmatpush2.bf16.msra.mxu0 0
  %305 = vmatprep.subr.bf16.mxu0 0
  %306 = vmatpush2.bf16.msra.mxu0 0
  %307 = vmatprep.subr.bf16.mxu0 0
  %308 = vmatpush2.bf16.msra.mxu0 0
  %309 = vmatprep.subr.bf16.mxu0 0
  %310 = vmatpush2.bf16.msra.mxu0 0
  %311 = vmatprep.subr.bf16.mxu0 0
  %312 = vmatpush2.bf16.msra.mxu0 0
  %313 = vmatprep.subr.bf16.mxu0 0
  %314 = vmatpush2.bf16.msra.mxu0 0
  %315 = vmatprep.subr.bf16.mxu0 0
  %316 = vmatpush2.bf16.msra.mxu0 0
  %317 = vmatprep.subr.bf16.mxu0 0
  %318 = vmatpush2.bf16.msra.mxu0 0
  %319 = vmatprep.mubr.bf16.mxu0 0
  %320 = vmatmul.mubr.bf16.gmra.mxu0 %v285
  %v321 = vpop.f32.mrf.mxu0
  %v322 = vadd.f32 0.0, %v321
  %v323 = vpop.f32.mrf.mxu0
  %v324 = vpop.f32.mrf.mxu0
  %v325 = vpop.f32.mrf.mxu0
  %326 = vdwg.mxu0
  %v327 = vadd.f32 %v279, %v322
  %v328 = vxor.u32 %v327, 2147483648
  %v329 = vmul.f32 %v328, 1.442695
  %v330 = vpow.pop %v329
  %v331 = vadd.f32 %v330, 1.0
  %v332 = vrcp.pop %v331
  %v333 = vmul.f32 1.0, %v332
  %v334 = vtanh.pop %v327
  %v335 = vmul.f32 %v333, %v271
  %337 = vrot.lane.b32.xlu0 %v334, 64
  %v338 = vpop.permute.xlu0 %337
  %v340 = vmul.f32 %v333, %v338
  %342 = vrot.lane.b32.xlu0 %v340, 32
  %v343 = vpop.permute.xlu0 %342
  %v345 = vadd.f32 %v335, %v343
  %v346 = vtanh.pop %v345
  %348 = vrot.lane.b32.xlu0 %v346, 64
  %v349 = vpop.permute.xlu0 %348
  %v351 = vmul.f32 %v333, %v349
  %s352 = sadd.s32 %s170, 1
  %v353 = vstv %s352
  %vm354 = vcmp.lt.s32.totalorder %v353, %v169
  %v355 = vsel %vm354, 1, 0
  %356 = vset.pattern.permute.xlu0 0
  %357 = vperm.xlu0 %356, %v355
  %v358 = vpop.permute.xlu0 %357
  %vm359 = vcmp.eq.s32.totalorder %v358, 1
  %v360 = vsel %vm359, %v351, %v270
  %v361 = vsel %vm359, %v345, %v271
  %v362 = vsel %vm359, %v351, 0.0
  %364 = vrot.lane.b32.xlu0 %v362, 32
  %v365 = vpop.permute.xlu0 %364
  %s367 = scalar_lea.vmem %s5, 8
  %368 = vst.msk [vmem:[%s367] sm:$0xff] %vm79, %v365
  %s369 = scalar_lea.vmem [#allocation2], 16
  %v370 = vld [vmem:[%s369] sm:$0xff]
  %v371 = vpack.c.bf16 %v360, %v360
  %373 = vrot.lane.b32.xlu0 %v371, 32
  %v374 = vpop.permute.xlu0 %373
  %v376 = vsel %vm79, %v374, 0
  %378 = vmatprep.subr.bf16.mxu0 0
  %379 = vmatpush1.bf16.msra.mxu0 0
  %380 = vmatprep.subr.bf16.mxu0 0
  %381 = vmatpush1.bf16.msra.mxu0 0
  %382 = vmatprep.subr.bf16.mxu0 0
  %383 = vmatpush1.bf16.msra.mxu0 0
  %384 = vmatprep.subr.bf16.mxu0 0
  %385 = vmatpush1.bf16.msra.mxu0 0
  %386 = vmatprep.subr.bf16.mxu0 0
  %387 = vmatpush1.bf16.msra.mxu0 0
  %388 = vmatprep.subr.bf16.mxu0 0
  %389 = vmatpush1.bf16.msra.mxu0 0
  %390 = vmatprep.subr.bf16.mxu0 0
  %391 = vmatpush1.bf16.msra.mxu0 %v184
  %392 = vmatprep.subr.bf16.mxu0 0
  %393 = vmatpush1.bf16.msra.mxu0 %v183
  %394 = vmatprep.subr.bf16.mxu0 0
  %395 = vmatpush2.bf16.msra.mxu0 0
  %396 = vmatprep.subr.bf16.mxu0 0
  %397 = vmatpush2.bf16.msra.mxu0 0
  %398 = vmatprep.subr.bf16.mxu0 0
  %399 = vmatpush2.bf16.msra.mxu0 0
  %400 = vmatprep.subr.bf16.mxu0 0
  %401 = vmatpush2.bf16.msra.mxu0 0
  %402 = vmatprep.subr.bf16.mxu0 0
  %403 = vmatpush2.bf16.msra.mxu0 0
  %404 = vmatprep.subr.bf16.mxu0 0
  %405 = vmatpush2.bf16.msra.mxu0 0
  %406 = vmatprep.subr.bf16.mxu0 0
  %407 = vmatpush2.bf16.msra.mxu0 0
  %408 = vmatprep.subr.bf16.mxu0 0
  %409 = vmatpush2.bf16.msra.mxu0 0
  %410 = vmatprep.mubr.bf16.mxu0 0
  %411 = vmatmul.mubr.bf16.gmra.mxu0 %v376
  %v412 = vpop.f32.mrf.mxu0
  %v413 = vadd.f32 0.0, %v412
  %v414 = vpop.f32.mrf.mxu0
  %v415 = vpop.f32.mrf.mxu0
  %v416 = vpop.f32.mrf.mxu0
  %417 = vdwg.mxu0
  %v418 = vadd.f32 %v370, %v413
  %v419 = vxor.u32 %v418, 2147483648
  %v420 = vmul.f32 %v419, 1.442695
  %v421 = vpow.pop %v420
  %v422 = vadd.f32 %v421, 1.0
  %v423 = vrcp.pop %v422
  %v424 = vmul.f32 1.0, %v423
  %v425 = vtanh.pop %v418
  %v426 = vmul.f32 %v424, %v361
  %428 = vrot.lane.b32.xlu0 %v425, 64
  %v429 = vpop.permute.xlu0 %428
  %v431 = vmul.f32 %v424, %v429
  %433 = vrot.lane.b32.xlu0 %v431, 32
  %v434 = vpop.permute.xlu0 %433
  %v436 = vadd.f32 %v426, %v434
  %v437 = vtanh.pop %v436
  %439 = vrot.lane.b32.xlu0 %v437, 64
  %v440 = vpop.permute.xlu0 %439
  %v442 = vmul.f32 %v424, %v440
  %s443 = sadd.s32 %s170, 2
  %v444 = vstv %s443
  %vm445 = vcmp.lt.s32.totalorder %v444, %v169
  %v446 = vsel %vm445, 1, 0
  %447 = vset.pattern.permute.xlu0 0
  %448 = vperm.xlu0 %447, %v446
  %v449 = vpop.permute.xlu0 %448
  %vm450 = vcmp.eq.s32.totalorder %v449, 1
  %v451 = vsel %vm450, %v442, %v360
  %v452 = vsel %vm450, %v436, %v361
  %v453 = vsel %vm450, %v442, 0.0
  %455 = vrot.lane.b32.xlu0 %v453, 32
  %v456 = vpop.permute.xlu0 %455
  %s458 = scalar_lea.vmem %s5, 16
  %459 = vst.msk [vmem:[%s458] sm:$0xff] %vm79, %v456
  %s460 = scalar_lea.vmem [#allocation2], 24
  %v461 = vld [vmem:[%s460] sm:$0xff]
  %v462 = vpack.c.bf16 %v451, %v451
  %464 = vrot.lane.b32.xlu0 %v462, 32
  %v465 = vpop.permute.xlu0 %464
  %v467 = vsel %vm79, %v465, 0
  %469 = vmatprep.subr.bf16.mxu0 0
  %470 = vmatpush1.bf16.msra.mxu0 0
  %471 = vmatprep.subr.bf16.mxu0 0
  %472 = vmatpush1.bf16.msra.mxu0 0
  %473 = vmatprep.subr.bf16.mxu0 0
  %474 = vmatpush1.bf16.msra.mxu0 0
  %475 = vmatprep.subr.bf16.mxu0 0
  %476 = vmatpush1.bf16.msra.mxu0 0
  %477 = vmatprep.subr.bf16.mxu0 0
  %478 = vmatpush1.bf16.msra.mxu0 0
  %479 = vmatprep.subr.bf16.mxu0 0
  %480 = vmatpush1.bf16.msra.mxu0 0
  %481 = vmatprep.subr.bf16.mxu0 0
  %482 = vmatpush1.bf16.msra.mxu0 %v184
  %483 = vmatprep.subr.bf16.mxu0 0
  %484 = vmatpush1.bf16.msra.mxu0 %v183
  %485 = vmatprep.subr.bf16.mxu0 0
  %486 = vmatpush2.bf16.msra.mxu0 0
  %487 = vmatprep.subr.bf16.mxu0 0
  %488 = vmatpush2.bf16.msra.mxu0 0
  %489 = vmatprep.subr.bf16.mxu0 0
  %490 = vmatpush2.bf16.msra.mxu0 0
  %491 = vmatprep.subr.bf16.mxu0 0
  %492 = vmatpush2.bf16.msra.mxu0 0
  %493 = vmatprep.subr.bf16.mxu0 0
  %494 = vmatpush2.bf16.msra.mxu0 0
  %495 = vmatprep.subr.bf16.mxu0 0
  %496 = vmatpush2.bf16.msra.mxu0 0
  %497 = vmatprep.subr.bf16.mxu0 0
  %498 = vmatpush2.bf16.msra.mxu0 0
  %499 = vmatprep.subr.bf16.mxu0 0
  %500 = vmatpush2.bf16.msra.mxu0 0
  %501 = vmatprep.mubr.bf16.mxu0 0
  %502 = vmatmul.mubr.bf16.gmra.mxu0 %v467
  %v503 = vpop.f32.mrf.mxu0
  %v504 = vadd.f32 0.0, %v503
  %v505 = vpop.f32.mrf.mxu0
  %v506 = vpop.f32.mrf.mxu0
  %v507 = vpop.f32.mrf.mxu0
  %508 = vdwg.mxu0
  %v509 = vadd.f32 %v461, %v504
  %v510 = vxor.u32 %v509, 2147483648
  %v511 = vmul.f32 %v510, 1.442695
  %v512 = vpow.pop %v511
  %v513 = vadd.f32 %v512, 1.0
  %v514 = vrcp.pop %v513
  %v515 = vmul.f32 1.0, %v514
  %v516 = vtanh.pop %v509
  %v517 = vmul.f32 %v515, %v452
  %519 = vrot.lane.b32.xlu0 %v516, 64
  %v520 = vpop.permute.xlu0 %519
  %v522 = vmul.f32 %v515, %v520
  %524 = vrot.lane.b32.xlu0 %v522, 32
  %v525 = vpop.permute.xlu0 %524
  %v527 = vadd.f32 %v517, %v525
  %v528 = vtanh.pop %v527
  %530 = vrot.lane.b32.xlu0 %v528, 64
  %v531 = vpop.permute.xlu0 %530
  %v533 = vmul.f32 %v515, %v531
  %s534 = sadd.s32 %s170, 3
  %v535 = vstv %s534
  %vm536 = vcmp.lt.s32.totalorder %v535, %v169
  %v537 = vsel %vm536, 1, 0
  %538 = vset.pattern.permute.xlu0 0
  %539 = vperm.xlu0 %538, %v537
  %v540 = vpop.permute.xlu0 %539
  %vm541 = vcmp.eq.s32.totalorder %v540, 1
  %v542 = vsel %vm541, %v533, %v451
  %v543 = vsel %vm541, %v527, %v452
  %v544 = vsel %vm541, %v533, 0.0
  %546 = vrot.lane.b32.xlu0 %v544, 32
  %v547 = vpop.permute.xlu0 %546
  %s549 = scalar_lea.vmem %s5, 24
  %550 = vst.msk [vmem:[%s549] sm:$0xff] %vm79, %v547
  %s551 = scalar_lea.vmem [#allocation2], 32
  %v552 = vld [vmem:[%s551] sm:$0xff]
  %v553 = vpack.c.bf16 %v542, %v542
  %555 = vrot.lane.b32.xlu0 %v553, 32
  %v556 = vpop.permute.xlu0 %555
  %v558 = vsel %vm79, %v556, 0
  %560 = vmatprep.subr.bf16.mxu0 0
  %561 = vmatpush1.bf16.msra.mxu0 0
  %562 = vmatprep.subr.bf16.mxu0 0
  %563 = vmatpush1.bf16.msra.mxu0 0
  %564 = vmatprep.subr.bf16.mxu0 0
  %565 = vmatpush1.bf16.msra.mxu0 0
  %566 = vmatprep.subr.bf16.mxu0 0
  %567 = vmatpush1.bf16.msra.mxu0 0
  %568 = vmatprep.subr.bf16.mxu0 0
  %569 = vmatpush1.bf16.msra.mxu0 0
  %570 = vmatprep.subr.bf16.mxu0 0
  %571 = vmatpush1.bf16.msra.mxu0 0
  %572 = vmatprep.subr.bf16.mxu0 0
  %573 = vmatpush1.bf16.msra.mxu0 %v184
  %574 = vmatprep.subr.bf16.mxu0 0
  %575 = vmatpush1.bf16.msra.mxu0 %v183
  %576 = vmatprep.subr.bf16.mxu0 0
  %577 = vmatpush2.bf16.msra.mxu0 0
  %578 = vmatprep.subr.bf16.mxu0 0
  %579 = vmatpush2.bf16.msra.mxu0 0
  %580 = vmatprep.subr.bf16.mxu0 0
  %581 = vmatpush2.bf16.msra.mxu0 0
  %582 = vmatprep.subr.bf16.mxu0 0
  %583 = vmatpush2.bf16.msra.mxu0 0
  %584 = vmatprep.subr.bf16.mxu0 0
  %585 = vmatpush2.bf16.msra.mxu0 0
  %586 = vmatprep.subr.bf16.mxu0 0
  %587 = vmatpush2.bf16.msra.mxu0 0
  %588 = vmatprep.subr.bf16.mxu0 0
  %589 = vmatpush2.bf16.msra.mxu0 0
  %590 = vmatprep.subr.bf16.mxu0 0
  %591 = vmatpush2.bf16.msra.mxu0 0
  %592 = vmatprep.mubr.bf16.mxu0 0
  %593 = vmatmul.mubr.bf16.gmra.mxu0 %v558
  %v594 = vpop.f32.mrf.mxu0
  %v595 = vadd.f32 0.0, %v594
  %v596 = vpop.f32.mrf.mxu0
  %v597 = vpop.f32.mrf.mxu0
  %v598 = vpop.f32.mrf.mxu0
  %599 = vdwg.mxu0
  %v600 = vadd.f32 %v552, %v595
  %v601 = vxor.u32 %v600, 2147483648
  %v602 = vmul.f32 %v601, 1.442695
  %v603 = vpow.pop %v602
  %v604 = vadd.f32 %v603, 1.0
  %v605 = vrcp.pop %v604
  %v606 = vmul.f32 1.0, %v605
  %v607 = vtanh.pop %v600
  %v608 = vmul.f32 %v606, %v543
  %610 = vrot.lane.b32.xlu0 %v607, 64
  %v611 = vpop.permute.xlu0 %610
  %v613 = vmul.f32 %v606, %v611
  %615 = vrot.lane.b32.xlu0 %v613, 32
  %v616 = vpop.permute.xlu0 %615
  %v618 = vadd.f32 %v608, %v616
  %v619 = vtanh.pop %v618
  %621 = vrot.lane.b32.xlu0 %v619, 64
  %v622 = vpop.permute.xlu0 %621
  %v624 = vmul.f32 %v606, %v622
  %s625 = sadd.s32 %s170, 4
  %v626 = vstv %s625
  %vm627 = vcmp.lt.s32.totalorder %v626, %v169
  %v628 = vsel %vm627, 1, 0
  %629 = vset.pattern.permute.xlu0 0
  %630 = vperm.xlu0 %629, %v628
  %v631 = vpop.permute.xlu0 %630
  %vm632 = vcmp.eq.s32.totalorder %v631, 1
  %v633 = vsel %vm632, %v624, %v542
  %v634 = vsel %vm632, %v618, %v543
  %v635 = vsel %vm632, %v624, 0.0
  %637 = vrot.lane.b32.xlu0 %v635, 32
  %v638 = vpop.permute.xlu0 %637
  %s640 = scalar_lea.vmem %s5, 32
  %641 = vst.msk [vmem:[%s640] sm:$0xff] %vm79, %v638
  %s642 = scalar_lea.vmem [#allocation2], 40
  %v643 = vld [vmem:[%s642] sm:$0xff]
  %v644 = vpack.c.bf16 %v633, %v633
  %646 = vrot.lane.b32.xlu0 %v644, 32
  %v647 = vpop.permute.xlu0 %646
  %v649 = vsel %vm79, %v647, 0
  %651 = vmatprep.subr.bf16.mxu0 0
  %652 = vmatpush1.bf16.msra.mxu0 0
  %653 = vmatprep.subr.bf16.mxu0 0
  %654 = vmatpush1.bf16.msra.mxu0 0
  %655 = vmatprep.subr.bf16.mxu0 0
  %656 = vmatpush1.bf16.msra.mxu0 0
  %657 = vmatprep.subr.bf16.mxu0 0
  %658 = vmatpush1.bf16.msra.mxu0 0
  %659 = vmatprep.subr.bf16.mxu0 0
  %660 = vmatpush1.bf16.msra.mxu0 0
  %661 = vmatprep.subr.bf16.mxu0 0
  %662 = vmatpush1.bf16.msra.mxu0 0
  %663 = vmatprep.subr.bf16.mxu0 0
  %664 = vmatpush1.bf16.msra.mxu0 %v184
  %665 = vmatprep.subr.bf16.mxu0 0
  %666 = vmatpush1.bf16.msra.mxu0 %v183
  %667 = vmatprep.subr.bf16.mxu0 0
  %668 = vmatpush2.bf16.msra.mxu0 0
  %669 = vmatprep.subr.bf16.mxu0 0
  %670 = vmatpush2.bf16.msra.mxu0 0
  %671 = vmatprep.subr.bf16.mxu0 0
  %672 = vmatpush2.bf16.msra.mxu0 0
  %673 = vmatprep.subr.bf16.mxu0 0
  %674 = vmatpush2.bf16.msra.mxu0 0
  %675 = vmatprep.subr.bf16.mxu0 0
  %676 = vmatpush2.bf16.msra.mxu0 0
  %677 = vmatprep.subr.bf16.mxu0 0
  %678 = vmatpush2.bf16.msra.mxu0 0
  %679 = vmatprep.subr.bf16.mxu0 0
  %680 = vmatpush2.bf16.msra.mxu0 0
  %681 = vmatprep.subr.bf16.mxu0 0
  %682 = vmatpush2.bf16.msra.mxu0 0
  %683 = vmatprep.mubr.bf16.mxu0 0
  %684 = vmatmul.mubr.bf16.gmra.mxu0 %v649
  %v685 = vpop.f32.mrf.mxu0
  %v686 = vadd.f32 0.0, %v685
  %v687 = vpop.f32.mrf.mxu0
  %v688 = vpop.f32.mrf.mxu0
  %v689 = vpop.f32.mrf.mxu0
  %690 = vdwg.mxu0
  %v691 = vadd.f32 %v643, %v686
  %v692 = vxor.u32 %v691, 2147483648
  %v693 = vmul.f32 %v692, 1.442695
  %v694 = vpow.pop %v693
  %v695 = vadd.f32 %v694, 1.0
  %v696 = vrcp.pop %v695
  %v697 = vmul.f32 1.0, %v696
  %v698 = vtanh.pop %v691
  %v699 = vmul.f32 %v697, %v634
  %701 = vrot.lane.b32.xlu0 %v698, 64
  %v702 = vpop.permute.xlu0 %701
  %v704 = vmul.f32 %v697, %v702
  %706 = vrot.lane.b32.xlu0 %v704, 32
  %v707 = vpop.permute.xlu0 %706
  %v709 = vadd.f32 %v699, %v707
  %v710 = vtanh.pop %v709
  %712 = vrot.lane.b32.xlu0 %v710, 64
  %v713 = vpop.permute.xlu0 %712
  %v715 = vmul.f32 %v697, %v713
  %s716 = sadd.s32 %s170, 5
  %v717 = vstv %s716
  %vm718 = vcmp.lt.s32.totalorder %v717, %v169
  %v719 = vsel %vm718, 1, 0
  %720 = vset.pattern.permute.xlu0 0
  %721 = vperm.xlu0 %720, %v719
  %v722 = vpop.permute.xlu0 %721
  %vm723 = vcmp.eq.s32.totalorder %v722, 1
  %v724 = vsel %vm723, %v715, %v633
  %v725 = vsel %vm723, %v709, %v634
  %v726 = vsel %vm723, %v715, 0.0
  %728 = vrot.lane.b32.xlu0 %v726, 32
  %v729 = vpop.permute.xlu0 %728
  %s731 = scalar_lea.vmem %s5, 40
  %732 = vst.msk [vmem:[%s731] sm:$0xff] %vm79, %v729
  %s733 = scalar_lea.vmem [#allocation2], 48
  %v734 = vld [vmem:[%s733] sm:$0xff]
  %v735 = vpack.c.bf16 %v724, %v724
  %737 = vrot.lane.b32.xlu0 %v735, 32
  %v738 = vpop.permute.xlu0 %737
  %v740 = vsel %vm79, %v738, 0
  %742 = vmatprep.subr.bf16.mxu0 0
  %743 = vmatpush1.bf16.msra.mxu0 0
  %744 = vmatprep.subr.bf16.mxu0 0
  %745 = vmatpush1.bf16.msra.mxu0 0
  %746 = vmatprep.subr.bf16.mxu0 0
  %747 = vmatpush1.bf16.msra.mxu0 0
  %748 = vmatprep.subr.bf16.mxu0 0
  %749 = vmatpush1.bf16.msra.mxu0 0
  %750 = vmatprep.subr.bf16.mxu0 0
  %751 = vmatpush1.bf16.msra.mxu0 0
  %752 = vmatprep.subr.bf16.mxu0 0
  %753 = vmatpush1.bf16.msra.mxu0 0
  %754 = vmatprep.subr.bf16.mxu0 0
  %755 = vmatpush1.bf16.msra.mxu0 %v184
  %756 = vmatprep.subr.bf16.mxu0 0
  %757 = vmatpush1.bf16.msra.mxu0 %v183
  %758 = vmatprep.subr.bf16.mxu0 0
  %759 = vmatpush2.bf16.msra.mxu0 0
  %760 = vmatprep.subr.bf16.mxu0 0
  %761 = vmatpush2.bf16.msra.mxu0 0
  %762 = vmatprep.subr.bf16.mxu0 0
  %763 = vmatpush2.bf16.msra.mxu0 0
  %764 = vmatprep.subr.bf16.mxu0 0
  %765 = vmatpush2.bf16.msra.mxu0 0
  %766 = vmatprep.subr.bf16.mxu0 0
  %767 = vmatpush2.bf16.msra.mxu0 0
  %768 = vmatprep.subr.bf16.mxu0 0
  %769 = vmatpush2.bf16.msra.mxu0 0
  %770 = vmatprep.subr.bf16.mxu0 0
  %771 = vmatpush2.bf16.msra.mxu0 0
  %772 = vmatprep.subr.bf16.mxu0 0
  %773 = vmatpush2.bf16.msra.mxu0 0
  %774 = vmatprep.mubr.bf16.mxu0 0
  %775 = vmatmul.mubr.bf16.gmra.mxu0 %v740
  %v776 = vpop.f32.mrf.mxu0
  %v777 = vadd.f32 0.0, %v776
  %v778 = vpop.f32.mrf.mxu0
  %v779 = vpop.f32.mrf.mxu0
  %v780 = vpop.f32.mrf.mxu0
  %781 = vdwg.mxu0
  %v782 = vadd.f32 %v734, %v777
  %v783 = vxor.u32 %v782, 2147483648
  %v784 = vmul.f32 %v783, 1.442695
  %v785 = vpow.pop %v784
  %v786 = vadd.f32 %v785, 1.0
  %v787 = vrcp.pop %v786
  %v788 = vmul.f32 1.0, %v787
  %v789 = vtanh.pop %v782
  %v790 = vmul.f32 %v788, %v725
  %792 = vrot.lane.b32.xlu0 %v789, 64
  %v793 = vpop.permute.xlu0 %792
  %v795 = vmul.f32 %v788, %v793
  %797 = vrot.lane.b32.xlu0 %v795, 32
  %v798 = vpop.permute.xlu0 %797
  %v800 = vadd.f32 %v790, %v798
  %v801 = vtanh.pop %v800
  %803 = vrot.lane.b32.xlu0 %v801, 64
  %v804 = vpop.permute.xlu0 %803
  %v806 = vmul.f32 %v788, %v804
  %s807 = sadd.s32 %s170, 6
  %v808 = vstv %s807
  %vm809 = vcmp.lt.s32.totalorder %v808, %v169
  %v810 = vsel %vm809, 1, 0
  %811 = vset.pattern.permute.xlu0 0
  %812 = vperm.xlu0 %811, %v810
  %v813 = vpop.permute.xlu0 %812
  %vm814 = vcmp.eq.s32.totalorder %v813, 1
  %v815 = vsel %vm814, %v806, %v724
  %v816 = vsel %vm814, %v800, %v725
  %v817 = vsel %vm814, %v806, 0.0
  %819 = vrot.lane.b32.xlu0 %v817, 32
  %v820 = vpop.permute.xlu0 %819
  %s822 = scalar_lea.vmem %s5, 48
  %823 = vst.msk [vmem:[%s822] sm:$0xff] %vm79, %v820
  %s824 = scalar_lea.vmem [#allocation2], 56
  %v825 = vld [vmem:[%s824] sm:$0xff]
  %v826 = vpack.c.bf16 %v815, %v815
  %828 = vrot.lane.b32.xlu0 %v826, 32
  %v829 = vpop.permute.xlu0 %828
  %v831 = vsel %vm79, %v829, 0
  %833 = vmatprep.subr.bf16.mxu0 0
  %834 = vmatpush1.bf16.msra.mxu0 0
  %835 = vmatprep.subr.bf16.mxu0 0
  %836 = vmatpush1.bf16.msra.mxu0 0
  %837 = vmatprep.subr.bf16.mxu0 0
  %838 = vmatpush1.bf16.msra.mxu0 0
  %839 = vmatprep.subr.bf16.mxu0 0
  %840 = vmatpush1.bf16.msra.mxu0 0
  %841 = vmatprep.subr.bf16.mxu0 0
  %842 = vmatpush1.bf16.msra.mxu0 0
  %843 = vmatprep.subr.bf16.mxu0 0
  %844 = vmatpush1.bf16.msra.mxu0 0
  %845 = vmatprep.subr.bf16.mxu0 0
  %846 = vmatpush1.bf16.msra.mxu0 %v184
  %847 = vmatprep.subr.bf16.mxu0 0
  %848 = vmatpush1.bf16.msra.mxu0 %v183
  %849 = vmatprep.subr.bf16.mxu0 0
  %850 = vmatpush2.bf16.msra.mxu0 0
  %851 = vmatprep.subr.bf16.mxu0 0
  %852 = vmatpush2.bf16.msra.mxu0 0
  %853 = vmatprep.subr.bf16.mxu0 0
  %854 = vmatpush2.bf16.msra.mxu0 0
  %855 = vmatprep.subr.bf16.mxu0 0
  %856 = vmatpush2.bf16.msra.mxu0 0
  %857 = vmatprep.subr.bf16.mxu0 0
  %858 = vmatpush2.bf16.msra.mxu0 0
  %859 = vmatprep.subr.bf16.mxu0 0
  %860 = vmatpush2.bf16.msra.mxu0 0
  %861 = vmatprep.subr.bf16.mxu0 0
  %862 = vmatpush2.bf16.msra.mxu0 0
  %863 = vmatprep.subr.bf16.mxu0 0
  %864 = vmatpush2.bf16.msra.mxu0 0
  %865 = vmatprep.mubr.bf16.mxu0 0
  %866 = vmatmul.mubr.bf16.gmra.mxu0 %v831
  %v867 = vpop.f32.mrf.mxu0
  %v868 = vadd.f32 0.0, %v867
  %v869 = vpop.f32.mrf.mxu0
  %v870 = vpop.f32.mrf.mxu0
  %v871 = vpop.f32.mrf.mxu0
  %872 = vdwg.mxu0
  %v873 = vadd.f32 %v825, %v868
  %v874 = vxor.u32 %v873, 2147483648
  %v875 = vmul.f32 %v874, 1.442695
  %v876 = vpow.pop %v875
  %v877 = vadd.f32 %v876, 1.0
  %v878 = vrcp.pop %v877
  %v879 = vmul.f32 1.0, %v878
  %v880 = vtanh.pop %v873
  %v881 = vmul.f32 %v879, %v816
  %883 = vrot.lane.b32.xlu0 %v880, 64
  %v884 = vpop.permute.xlu0 %883
  %v886 = vmul.f32 %v879, %v884
  %888 = vrot.lane.b32.xlu0 %v886, 32
  %v889 = vpop.permute.xlu0 %888
  %v891 = vadd.f32 %v881, %v889
  %v892 = vtanh.pop %v891
  %894 = vrot.lane.b32.xlu0 %v892, 64
  %v895 = vpop.permute.xlu0 %894
  %v897 = vmul.f32 %v879, %v895
  %s898 = sadd.s32 %s170, 7
  %v899 = vstv %s898
  %vm900 = vcmp.lt.s32.totalorder %v899, %v169
  %v901 = vsel %vm900, 1, 0
  %902 = vset.pattern.permute.xlu0 0
  %903 = vperm.xlu0 %902, %v901
  %v904 = vpop.permute.xlu0 %903
  %vm905 = vcmp.eq.s32.totalorder %v904, 1
  %v906 = vsel %vm905, %v897, %v815
  %v907 = vsel %vm905, %v891, %v816
  %v908 = vsel %vm905, %v897, 0.0
  %910 = vrot.lane.b32.xlu0 %v908, 32
  %v911 = vpop.permute.xlu0 %910
  %s913 = scalar_lea.vmem %s5, 56
  %914 = vst.msk [vmem:[%s913] sm:$0xff] %vm79, %v911
  %916 = vrot.lane.b32.xlu0 %v906, 32
  %v917 = vpop.permute.xlu0 %916
  %919 = vst.msk [vmem:[#allocation3] sm:$0xff] %vm79, %v917
  %921 = vrot.lane.b32.xlu0 %v907, 96
  %v922 = vpop.permute.xlu0 %921
  %924 = vst.msk [vmem:[#allocation4] sm:$0xff] %vm79, %v922
  // Predicated region
  $region26: #{tpu_custom_call.1} parent=0 // pred_check
    _
  $region27: #{tpu_custom_call.1} parent=0 // pred_check_branch
    %926 = sbr.rel (0) target = $region29
  $region28: #{tpu_custom_call.1} parent=0 // pred_region
    _
  $region29: #{tpu_custom_call.1} parent=0 // pred_fallthru
    _
  // Predicated region
  $region30: #{tpu_custom_call.1} parent=0 // pred_check
    _
  $region31: #{tpu_custom_call.1} parent=0 // pred_check_branch
    %928 = sbr.rel (0) target = $region33
  $region32: #{tpu_custom_call.1} parent=0 // pred_region
    _
  $region33: #{tpu_custom_call.1} parent=0 // pred_fallthru
    _

</llo_original>
